<compile_context>
chip_gen: v7x
topology: tpu7x:2x2x1
jax: 0.10.0
libtpu: 0.0.40
codegen_flags: <defaults>
</compile_context>

<pallas_src>
import math

import jax
import jax.numpy as jnp
from jax.experimental import pallas as pl
from jax.experimental.pallas import tpu as pltpu


def _attn_kernel(q_ref, kv_ref, mask_ref, w_ref, b_ref, out_ref, attn_w_ref):
    # q_ref:    (Nb, Lq,  H)
    # kv_ref:   (Nb, Lkv, H)
    # mask_ref: (Nb, 1,   Lkv) int32   (nonzero -> key position masked out)
    # w_ref:    (4, H, H)   pre-transposed [Wq^T*scale, Wk^T, Wv^T, Wo^T]
    # b_ref:    (4, 1, H)   [bq*scale, bk, bv, bo]
    nb, lq, h = q_ref.shape
    lkv = kv_ref.shape[1]

    # Pack all problems' rows along the sublane axis -> one MXU matmul per
    # projection for the whole block (instead of one per problem).
    q2 = q_ref[...].reshape(nb * lq, h)        # [Nb*Lq,  H]
    kv2 = kv_ref[...].reshape(nb * lkv, h)     # [Nb*Lkv, H]

    qp = jnp.dot(q2, w_ref[0], preferred_element_type=jnp.float32) + b_ref[0]
    kp = jnp.dot(kv2, w_ref[1], preferred_element_type=jnp.float32) + b_ref[1]
    vp = jnp.dot(kv2, w_ref[2], preferred_element_type=jnp.float32) + b_ref[2]

    qp = qp.reshape(nb, lq, h)
    kp = kp.reshape(nb, lkv, h)
    vp = vp.reshape(nb, lkv, h)

    # Scaled dot-product scores (scale already folded into Wq/bq).
    # Contract the shared last dim directly -> no explicit kp transpose.
    scores = jnp.einsum("nqd,nkd->nqk", qp, kp,
                        preferred_element_type=jnp.float32)   # [Nb, Lq, Lkv]

    # key_padding_mask: nonzero (True) -> masked out. Use a large finite
    # negative instead of -inf (cheaper select, no inf special cases).
    big_neg = jnp.asarray(-1e30, dtype=scores.dtype)
    scores = jnp.where(mask_ref[...] != 0, big_neg, scores)

    # Softmax over the key axis; reciprocal on the EUP (approx) instead of a
    # VPU divide.
    m = jnp.max(scores, axis=-1, keepdims=True)
    e = jnp.exp(scores - m)
    denom = jnp.sum(e, axis=-1, keepdims=True)
    attn = e * pl.reciprocal(denom, approx=True)              # [Nb, Lq, Lkv]

    # Context + out_proj (out_proj again packed along sublanes).
    ctx = jnp.einsum("nqk,nkd->nqd", attn, vp,
                     preferred_element_type=jnp.float32)      # [Nb, Lq, H]
    ctx2 = ctx.reshape(nb * lq, h)
    out = jnp.dot(ctx2, w_ref[3], preferred_element_type=jnp.float32) + b_ref[3]

    out_ref[...] = out.reshape(nb, lq, h).astype(out_ref.dtype)
    attn_w_ref[...] = attn.astype(attn_w_ref.dtype)


def attention_layer(query, keyvalue, key_padding_mask, params):
    """
    query:            [b, cs_num, Lq,  H]   float32
    keyvalue:         [b, cs_num, Lkv, H]   float32
    key_padding_mask: [b, cs_num, Lkv]      bool (True = ignore key)
    returns:
      attn_output:  [b, cs_num, Lq, H]
      attn_weights: [b, cs_num, Lq * Lkv]   (matches torch .view(b, cs, -1))
    """
    b, cs, Lq, H = query.shape
    Lkv = keyvalue.shape[2]
    N = b * cs

    # Collapse the N independent problems into at most 2 grid steps: one
    # block of Nb problems per step.  Two steps (when N >= 2) keep a
    # "parallel" axis that v7x's two TensorCores can split; on v5e/v6e the
    # second step just runs sequentially.  Everything (< 100 KB) fits in
    # VMEM on every TPU generation, so no vmem_limit override is needed.
    grid_n = 2 if N >= 2 else 1
    Nb = pl.cdiv(N, grid_n)
    N_pad = grid_n * Nb

    q = query.reshape(N, Lq, H).astype(jnp.float32)
    kv = keyvalue.reshape(N, Lkv, H).astype(jnp.float32)
    mask = key_padding_mask.reshape(N, 1, Lkv).astype(jnp.int32)

    if N_pad != N:
        pad = N_pad - N
        # Padded problems: zero inputs, all keys "valid" (mask=0) so the
        # softmax stays finite; their outputs are sliced off below.
        q = jnp.pad(q, ((0, pad), (0, 0), (0, 0)))
        kv = jnp.pad(kv, ((0, pad), (0, 0), (0, 0)))
        mask = jnp.pad(mask, ((0, pad), (0, 0), (0, 0)))

    # Fuse the four projection weights / biases into single inputs.  Weights
    # are pre-transposed (kernel computes x @ W^T as x @ w_ref[i]) and the
    # 1/sqrt(H) query scaling is folded into Wq / bq once here.
    scale = 1.0 / math.sqrt(H)
    w_fused = jnp.stack(
        [params["wq"].T * scale, params["wk"].T, params["wv"].T, params["wo"].T],
        axis=0).astype(jnp.float32)                               # (4, H, H)
    b_fused = jnp.stack(
        [params["bq"] * scale, params["bk"], params["bv"], params["bo"]],
        axis=0).reshape(4, 1, H).astype(jnp.float32)              # (4, 1, H)

    out, attn_w = pl.pallas_call(
        _attn_kernel,
        out_shape=(jax.ShapeDtypeStruct((N_pad, Lq, H), jnp.float32),
                   jax.ShapeDtypeStruct((N_pad, Lq, Lkv), jnp.float32)),
        grid_spec=pltpu.PrefetchScalarGridSpec(
            num_scalar_prefetch=0,
            grid=(grid_n,),
            in_specs=[
                pl.BlockSpec((Nb, Lq, H), lambda i: (i, 0, 0)),    # query block
                pl.BlockSpec((Nb, Lkv, H), lambda i: (i, 0, 0)),   # keyvalue block
                pl.BlockSpec((Nb, 1, Lkv), lambda i: (i, 0, 0)),   # mask block
                pl.BlockSpec((4, H, H), lambda i: (0, 0, 0)),      # fused W^T
                pl.BlockSpec((4, 1, H), lambda i: (0, 0, 0)),      # fused biases
            ],
            out_specs=[
                pl.BlockSpec((Nb, Lq, H), lambda i: (i, 0, 0)),
                pl.BlockSpec((Nb, Lq, Lkv), lambda i: (i, 0, 0)),
            ],
        ),
        compiler_params=pltpu.CompilerParams(
            dimension_semantics=("parallel",)),
    )(q, kv, mask, w_fused, b_fused)

    attn_output = out[:N].reshape(b, cs, Lq, H)
    attn_weights = attn_w[:N].reshape(b, cs, Lq * Lkv)
    return attn_output, attn_weights


def _reference(query, keyvalue, key_padding_mask, params):
    """Pure-JAX reference replicating nn.MultiheadAttention (num_heads=1)."""
    b, cs, Lq, H = query.shape
    Lkv = keyvalue.shape[2]
    N = b * cs
    q = query.reshape(N, Lq, H)
    kv = keyvalue.reshape(N, Lkv, H)
    mask = key_padding_mask.reshape(N, 1, Lkv)

    qp = q @ params["wq"].T + params["bq"]
    kp = kv @ params["wk"].T + params["bk"]
    vp = kv @ params["wv"].T + params["bv"]
    scale = 1.0 / math.sqrt(H)
    scores = jnp.einsum("nqh,nkh->nqk", qp * scale, kp)
    scores = scores + jnp.where(mask, -jnp.inf, 0.0)
    attn = jax.nn.softmax(scores, axis=-1)
    ctx = jnp.einsum("nqk,nkh->nqh", attn, vp)
    out = ctx @ params["wo"].T + params["bo"]
    return out.reshape(b, cs, Lq, H), attn.reshape(b, cs, Lq * Lkv)


if __name__ == "__main__":
    b, cs_num, Lq, Lkv, H = 2, 3, 8, 16, 32

    key = jax.random.PRNGKey(0)
    keys = jax.random.split(key, 12)

    query = jax.random.normal(keys[0], (b, cs_num, Lq, H), dtype=jnp.float32)
    keyvalue = jax.random.normal(keys[1], (b, cs_num, Lkv, H), dtype=jnp.float32)
    # key_padding_mask: True => masked key; keep position 0 always valid so no
    # row is fully masked (a fully-masked row gives NaN in torch; this kernel
    # would give a uniform row because it uses -1e30 instead of -inf).
    mask = jax.random.bernoulli(keys[2], 0.3, (b, cs_num, Lkv))
    mask = mask.at[..., 0].set(False)

    # deterministic synthetic MultiheadAttention parameters
    params = {
        "wq": 0.1 * jax.random.normal(keys[3], (H, H), dtype=jnp.float32),
        "wk": 0.1 * jax.random.normal(keys[4], (H, H), dtype=jnp.float32),
        "wv": 0.1 * jax.random.normal(keys[5], (H, H), dtype=jnp.float32),
        "wo": 0.1 * jax.random.normal(keys[6], (H, H), dtype=jnp.float32),
        "bq": 0.01 * jax.random.normal(keys[7], (H,), dtype=jnp.float32),
        "bk": 0.01 * jax.random.normal(keys[8], (H,), dtype=jnp.float32),
        "bv": 0.01 * jax.random.normal(keys[9], (H,), dtype=jnp.float32),
        "bo": 0.01 * jax.random.normal(keys[10], (H,), dtype=jnp.float32),
    }

    attn_out, attn_w = attention_layer(query, keyvalue, mask, params)
    jax.block_until_ready((attn_out, attn_w))

    ref_out, ref_w = _reference(query, keyvalue, mask, params)
    assert attn_out.shape == (b, cs_num, Lq, H)
    assert attn_w.shape == (b, cs_num, Lq * Lkv)
    # Tolerance relaxed vs. exact-divide version because the kernel uses the
    # EUP approximate reciprocal (approx=True) in the softmax normalization.
    assert jnp.allclose(attn_out, ref_out, atol=2e-3, rtol=2e-3)
    assert jnp.allclose(attn_w, ref_w, atol=2e-3, rtol=2e-3)

    print("KERNEL_OK")
</pallas_src>

<mosaic_0001>
module attributes {stable_mosaic.version = 11 : i64} {
  func.func @_attn_kernel(%arg0: i32, %arg1: memref<3x8x32xf32, #tpu.memory_space<vmem>>, %arg2: memref<3x16x32xf32, #tpu.memory_space<vmem>>, %arg3: memref<3x1x16xi32, #tpu.memory_space<vmem>>, %arg4: memref<4x32x32xf32, #tpu.memory_space<vmem>>, %arg5: memref<4x1x32xf32, #tpu.memory_space<vmem>>, %arg6: memref<3x8x32xf32, #tpu.memory_space<vmem>>, %arg7: memref<3x8x16xf32, #tpu.memory_space<vmem>>) attributes {dimension_semantics = [#tpu.dimension_semantics<parallel>], iteration_bounds = array<i64: 2>, scalar_prefetch = 0 : i64, scratch_operands = 0 : i64, tpu.core_type = #tpu.core_type<tc>, window_params = [{transform_indices = @transform_0, window_bounds = array<i64: 3, 8, 32>}, {transform_indices = @transform_1, window_bounds = array<i64: 3, 16, 32>}, {transform_indices = @transform_2, window_bounds = array<i64: 3, 1, 16>}, {pipeline_mode = #tpu.pipeline_mode<synchronous>, transform_indices = @transform_3, window_bounds = array<i64: 4, 32, 32>}, {pipeline_mode = #tpu.pipeline_mode<synchronous>, transform_indices = @transform_4, window_bounds = array<i64: 4, 1, 32>}, {transform_indices = @transform_5, window_bounds = array<i64: 3, 8, 32>}, {transform_indices = @transform_6, window_bounds = array<i64: 3, 8, 16>}]} {
    %c0 = arith.constant 0 : index
    %c0_0 = arith.constant 0 : index
    %c0_1 = arith.constant 0 : index
    %0 = vector.load %arg1[%c0, %c0_0, %c0_1] : memref<3x8x32xf32, #tpu.memory_space<vmem>>, vector<3x8x32xf32>
    %1 = vector.shape_cast %0 : vector<3x8x32xf32> to vector<24x32xf32>
    %c0_2 = arith.constant 0 : index
    %c0_3 = arith.constant 0 : index
    %c0_4 = arith.constant 0 : index
    %2 = vector.load %arg2[%c0_2, %c0_3, %c0_4] : memref<3x16x32xf32, #tpu.memory_space<vmem>>, vector<3x16x32xf32>
    %3 = vector.shape_cast %2 : vector<3x16x32xf32> to vector<48x32xf32>
    %c0_5 = arith.constant 0 : index
    %c0_6 = arith.constant 0 : index
    %c0_7 = arith.constant 0 : index
    %4 = vector.load %arg4[%c0_5, %c0_6, %c0_7] : memref<4x32x32xf32, #tpu.memory_space<vmem>>, vector<1x32x32xf32>
    %5 = vector.shape_cast %4 : vector<1x32x32xf32> to vector<32x32xf32>
    %cst = arith.constant dense<0.000000e+00> : vector<24x32xf32>
    %6 = tpu.matmul %1, %5, %cst {dimension_numbers = #tpu.dot_dimension_numbers<[1], [0], [0], [1], [0, 0, 1, 1], [], []>} : vector<24x32xf32>, vector<32x32xf32>, vector<24x32xf32> -> vector<24x32xf32>
    %c0_8 = arith.constant 0 : index
    %c0_9 = arith.constant 0 : index
    %c0_10 = arith.constant 0 : index
    %7 = vector.load %arg5[%c0_8, %c0_9, %c0_10] : memref<4x1x32xf32, #tpu.memory_space<vmem>>, vector<1x1x32xf32>
    %8 = vector.shape_cast %7 : vector<1x1x32xf32> to vector<1x32xf32>
    %9 = vector.broadcast %8 : vector<1x32xf32> to vector<24x32xf32>
    %10 = arith.addf %6, %9 : vector<24x32xf32>
    %c1 = arith.constant 1 : index
    %c0_11 = arith.constant 0 : index
    %c0_12 = arith.constant 0 : index
    %11 = vector.load %arg4[%c1, %c0_11, %c0_12] : memref<4x32x32xf32, #tpu.memory_space<vmem>>, vector<1x32x32xf32>
    %12 = vector.shape_cast %11 : vector<1x32x32xf32> to vector<32x32xf32>
    %cst_13 = arith.constant dense<0.000000e+00> : vector<48x32xf32>
    %13 = tpu.matmul %3, %12, %cst_13 {dimension_numbers = #tpu.dot_dimension_numbers<[1], [0], [0], [1], [0, 0, 1, 1], [], []>} : vector<48x32xf32>, vector<32x32xf32>, vector<48x32xf32> -> vector<48x32xf32>
    %c1_14 = arith.constant 1 : index
    %c0_15 = arith.constant 0 : index
    %c0_16 = arith.constant 0 : index
    %14 = vector.load %arg5[%c1_14, %c0_15, %c0_16] : memref<4x1x32xf32, #tpu.memory_space<vmem>>, vector<1x1x32xf32>
    %15 = vector.shape_cast %14 : vector<1x1x32xf32> to vector<1x32xf32>
    %16 = vector.broadcast %15 : vector<1x32xf32> to vector<48x32xf32>
    %17 = arith.addf %13, %16 : vector<48x32xf32>
    %c2 = arith.constant 2 : index
    %c0_17 = arith.constant 0 : index
    %c0_18 = arith.constant 0 : index
    %18 = vector.load %arg4[%c2, %c0_17, %c0_18] : memref<4x32x32xf32, #tpu.memory_space<vmem>>, vector<1x32x32xf32>
    %19 = vector.shape_cast %18 : vector<1x32x32xf32> to vector<32x32xf32>
    %cst_19 = arith.constant dense<0.000000e+00> : vector<48x32xf32>
    %20 = tpu.matmul %3, %19, %cst_19 {dimension_numbers = #tpu.dot_dimension_numbers<[1], [0], [0], [1], [0, 0, 1, 1], [], []>} : vector<48x32xf32>, vector<32x32xf32>, vector<48x32xf32> -> vector<48x32xf32>
    %c2_20 = arith.constant 2 : index
    %c0_21 = arith.constant 0 : index
    %c0_22 = arith.constant 0 : index
    %21 = vector.load %arg5[%c2_20, %c0_21, %c0_22] : memref<4x1x32xf32, #tpu.memory_space<vmem>>, vector<1x1x32xf32>
    %22 = vector.shape_cast %21 : vector<1x1x32xf32> to vector<1x32xf32>
    %23 = vector.broadcast %22 : vector<1x32xf32> to vector<48x32xf32>
    %24 = arith.addf %20, %23 : vector<48x32xf32>
    %25 = vector.shape_cast %10 : vector<24x32xf32> to vector<3x8x32xf32>
    %26 = vector.shape_cast %17 : vector<48x32xf32> to vector<3x16x32xf32>
    %27 = vector.shape_cast %24 : vector<48x32xf32> to vector<3x16x32xf32>
    "tpu.trace_start"() <{level = 10 : i32, message = "nqd,nkd->nqk"}> : () -> ()
    %cst_23 = arith.constant dense<0.000000e+00> : vector<3x8x16xf32>
    %28 = tpu.matmul %25, %26, %cst_23 {dimension_numbers = #tpu.dot_dimension_numbers<[2], [2], [1], [1], [0, 0, 0, 1, 1, 1], [0], [0]>} : vector<3x8x32xf32>, vector<3x16x32xf32>, vector<3x8x16xf32> -> vector<3x8x16xf32>
    "tpu.trace_stop"() : () -> ()
    %c0_24 = arith.constant 0 : index
    %c0_25 = arith.constant 0 : index
    %c0_26 = arith.constant 0 : index
    %29 = vector.load %arg3[%c0_24, %c0_25, %c0_26] : memref<3x1x16xi32, #tpu.memory_space<vmem>>, vector<3x1x16xi32>
    %c0_i32 = arith.constant 0 : i32
    %30 = vector.broadcast %c0_i32 : i32 to vector<3x1x16xi32>
    %31 = arith.cmpi ne, %29, %30 : vector<3x1x16xi32>
    %cst_27 = arith.constant -1.000000e+30 : f32
    %32 = vector.shape_cast %31 : vector<3x1x16xi1> to vector<3x1x16xi1>
    %33 = vector.broadcast %32 : vector<3x1x16xi1> to vector<3x8x16xi1>
    %34 = vector.broadcast %cst_27 : f32 to vector<3x8x16xf32>
    %35 = arith.select %33, %34, %28 : vector<3x8x16xi1>, vector<3x8x16xf32>
    %cst_28 = arith.constant dense<0xFF800000> : vector<3x8xf32>
    %36 = vector.multi_reduction <maximumf>, %35, %cst_28 [2] : vector<3x8x16xf32> to vector<3x8xf32>
    %37 = vector.shape_cast %36 : vector<3x8xf32> to vector<3x8x1xf32>
    %38 = vector.broadcast %37 : vector<3x8x1xf32> to vector<3x8x16xf32>
    %39 = arith.subf %35, %38 : vector<3x8x16xf32>
    %40 = math.exp %39 : vector<3x8x16xf32>
    %cst_29 = arith.constant dense<0.000000e+00> : vector<3x8xf32>
    %41 = vector.multi_reduction <add>, %40, %cst_29 [2] : vector<3x8x16xf32> to vector<3x8xf32>
    %42 = vector.shape_cast %41 : vector<3x8xf32> to vector<3x8x1xf32>
    %43 = tpu.reciprocal %42 {approx = true} : vector<3x8x1xf32> -> vector<3x8x1xf32>
    %44 = vector.broadcast %43 : vector<3x8x1xf32> to vector<3x8x16xf32>
    %45 = arith.mulf %40, %44 : vector<3x8x16xf32>
    "tpu.trace_start"() <{level = 10 : i32, message = "nqk,nkd->nqd"}> : () -> ()
    %cst_30 = arith.constant dense<0.000000e+00> : vector<3x8x32xf32>
    %46 = tpu.matmul %45, %27, %cst_30 {dimension_numbers = #tpu.dot_dimension_numbers<[2], [1], [1], [2], [0, 0, 0, 1, 1, 2], [0], [0]>} : vector<3x8x16xf32>, vector<3x16x32xf32>, vector<3x8x32xf32> -> vector<3x8x32xf32>
    "tpu.trace_stop"() : () -> ()
    %47 = vector.shape_cast %46 : vector<3x8x32xf32> to vector<24x32xf32>
    %c3 = arith.constant 3 : index
    %c0_31 = arith.constant 0 : index
    %c0_32 = arith.constant 0 : index
    %48 = vector.load %arg4[%c3, %c0_31, %c0_32] : memref<4x32x32xf32, #tpu.memory_space<vmem>>, vector<1x32x32xf32>
    %49 = vector.shape_cast %48 : vector<1x32x32xf32> to vector<32x32xf32>
    %cst_33 = arith.constant dense<0.000000e+00> : vector<24x32xf32>
    %50 = tpu.matmul %47, %49, %cst_33 {dimension_numbers = #tpu.dot_dimension_numbers<[1], [0], [0], [1], [0, 0, 1, 1], [], []>} : vector<24x32xf32>, vector<32x32xf32>, vector<24x32xf32> -> vector<24x32xf32>
    %c3_34 = arith.constant 3 : index
    %c0_35 = arith.constant 0 : index
    %c0_36 = arith.constant 0 : index
    %51 = vector.load %arg5[%c3_34, %c0_35, %c0_36] : memref<4x1x32xf32, #tpu.memory_space<vmem>>, vector<1x1x32xf32>
    %52 = vector.shape_cast %51 : vector<1x1x32xf32> to vector<1x32xf32>
    %53 = vector.broadcast %52 : vector<1x32xf32> to vector<24x32xf32>
    %54 = arith.addf %50, %53 : vector<24x32xf32>
    %55 = vector.shape_cast %54 : vector<24x32xf32> to vector<3x8x32xf32>
    %c0_37 = arith.constant 0 : index
    %c0_38 = arith.constant 0 : index
    %c0_39 = arith.constant 0 : index
    %56 = vector.load %arg6[%c0_37, %c0_38, %c0_39] : memref<3x8x32xf32, #tpu.memory_space<vmem>>, vector<3x8x32xf32>
    tpu.vector_store %arg6[%c0_37, %c0_38, %c0_39], %55 {strides = array<i32>} : memref<3x8x32xf32, #tpu.memory_space<vmem>>, vector<3x8x32xf32>,
    %c0_40 = arith.constant 0 : index
    %c0_41 = arith.constant 0 : index
    %c0_42 = arith.constant 0 : index
    %57 = vector.load %arg7[%c0_40, %c0_41, %c0_42] : memref<3x8x16xf32, #tpu.memory_space<vmem>>, vector<3x8x16xf32>
    tpu.vector_store %arg7[%c0_40, %c0_41, %c0_42], %45 {strides = array<i32>} : memref<3x8x16xf32, #tpu.memory_space<vmem>>, vector<3x8x16xf32>,
    return
  }
  func.func @transform_0(%arg0: i32) -> (i32, i32, i32) {
    %c0_i32 = arith.constant 0 : i32
    %c0_i32_0 = arith.constant 0 : i32
    %c0_i32_1 = arith.constant 0 : i32
    return %arg0, %c0_i32, %c0_i32_0 : i32, i32, i32
  }
  func.func @transform_1(%arg0: i32) -> (i32, i32, i32) {
    %c0_i32 = arith.constant 0 : i32
    %c0_i32_0 = arith.constant 0 : i32
    %c0_i32_1 = arith.constant 0 : i32
    return %arg0, %c0_i32, %c0_i32_0 : i32, i32, i32
  }
  func.func @transform_2(%arg0: i32) -> (i32, i32, i32) {
    %c0_i32 = arith.constant 0 : i32
    %c0_i32_0 = arith.constant 0 : i32
    %c0_i32_1 = arith.constant 0 : i32
    return %arg0, %c0_i32, %c0_i32_0 : i32, i32, i32
  }
  func.func @transform_3(%arg0: i32) -> (i32, i32, i32) {
    %c0_i32 = arith.constant 0 : i32
    %c0_i32_0 = arith.constant 0 : i32
    %c0_i32_1 = arith.constant 0 : i32
    %c0_i32_2 = arith.constant 0 : i32
    return %c0_i32, %c0_i32_0, %c0_i32_1 : i32, i32, i32
  }
  func.func @transform_4(%arg0: i32) -> (i32, i32, i32) {
    %c0_i32 = arith.constant 0 : i32
    %c0_i32_0 = arith.constant 0 : i32
    %c0_i32_1 = arith.constant 0 : i32
    %c0_i32_2 = arith.constant 0 : i32
    return %c0_i32, %c0_i32_0, %c0_i32_1 : i32, i32, i32
  }
  func.func @transform_5(%arg0: i32) -> (i32, i32, i32) {
    %c0_i32 = arith.constant 0 : i32
    %c0_i32_0 = arith.constant 0 : i32
    %c0_i32_1 = arith.constant 0 : i32
    return %arg0, %c0_i32, %c0_i32_0 : i32, i32, i32
  }
  func.func @transform_6(%arg0: i32) -> (i32, i32, i32) {
    %c0_i32 = arith.constant 0 : i32
    %c0_i32_0 = arith.constant 0 : i32
    %c0_i32_1 = arith.constant 0 : i32
    return %arg0, %c0_i32, %c0_i32_0 : i32, i32, i32
  }
}

</mosaic_0001>

<llo_original>
// kernel: tpu_custom_call.1
$region0: #{tpu_custom_call.1}
  #allocation0 [shape = 'u32[]', space=smem, size = 0x4, offset = 0x4, fixed_abs, tag = 'smem constant byte address 0x4 - core index']
  #allocation1 [shape = 'u32[144,128]{1,0:T(1,128)}', space=vmem, size = 0x12000, scoped, tag = 'internal scratch']
  %s0 = inlined_call_operand.hbm [shape: f32[6,8,32], index: 0, kind: input, shape index: {}]
  %s1 = inlined_call_operand.hbm [shape: f32[6,16,32], index: 1, kind: input, shape index: {}]
  %s2 = inlined_call_operand.vmem [shape: s32[6,1,16], index: 2, kind: input, shape index: {}]
  %s3 = inlined_call_operand.hbm [shape: f32[4,32,32], index: 3, kind: input, shape index: {}]
  %s4 = inlined_call_operand.vmem [shape: f32[4,1,32], index: 4, kind: input, shape index: {}]
  %s5 = inlined_call_operand.hbm [shape: f32[6,8,32], index: 5, kind: output, shape index: {0}]
  %s6 = inlined_call_operand.hbm [shape: f32[6,8,16], index: 6, kind: output, shape index: {1}]
  %7 = xla_tuple %s5, %s6
  %s8 = sld [smem:[#allocation0]]
  $region73: #{tpu_custom_call.1} parent=0
    _
  %s10 = ssub.s32 1, %s8
  %s11 = scalar_select 0, %s10, %s8
  $region1: #{tpu_custom_call.1} parent=0
    #allocation2 [shape = 'u8[24576]{0}', space=vmem, size = 0x6000, scoped, tag = 'input window, operand 0']
    #allocation3 [shape = 's32[2]{0}', space=sflag, size = 0x8, scoped, tag = 'scoped memory for tpu_custom_call.1']
    #allocation4 [shape = 's32[2]{0}', space=sflag, size = 0x8, scoped, tag = 'scoped memory for tpu_custom_call.1']
    #allocation5 [shape = 'u8[49152]{0}', space=vmem, size = 0xc000, scoped, tag = 'input window, operand 1']
    #allocation6 [shape = 's32[2]{0}', space=sflag, size = 0x8, scoped, tag = 'scoped memory for tpu_custom_call.1']
    #allocation7 [shape = 'u8[65536]{0}', space=vmem, size = 0x10000, scoped, tag = 'input window, operand 3, single buffered']
    #allocation8 [shape = 'u8[24576]{0}', space=vmem, size = 0x6000, scoped, tag = 'output window, operand 0']
    #allocation9 [shape = 'u8[24576]{0}', space=vmem, size = 0x6000, scoped, tag = 'output window, operand 1']
    #allocation10 [shape = 's32[2]{0}', space=sflag, size = 0x8, scoped, tag = 'scoped memory for tpu_custom_call.1']
    %12 = vsyncpa [#allocation3], 0
    %s13 = scalar_lea.sflag [#allocation3], 1
    %14 = vsyncpa %s13, 0
    %15 = vsyncpa [#allocation6], 0
    %s16 = scalar_lea.sflag [#allocation6], 1
    %17 = vsyncpa %s16, 0
    %18 = vsyncpa [#allocation4], 0
    %s19 = scalar_lea.sflag [#allocation4], 1
    %20 = vsyncpa %s19, 0
    %21 = vsyncpa [#allocation10], 0
    %s22 = scalar_lea.sflag [#allocation10], 1
    %23 = vsyncpa %s22, 0
    loop: start=0, step=1, limit=4
    $region2: #{tpu_custom_call.1} parent=1 // loop_pre_header
      _
    $region3: #{tpu_custom_call.1} parent=1 // loop_header
      %s25 = sphi 0, %s29
      %p26 = scmp.ge.s32.totalorder %s25, 4
      %s35 = sphi 0, %s37
      %s38 = sphi 0, %s35
      %s39 = sphi 0, %s38
      %s55 = sphi 0, %s39
      %s61 = sphi 0, %s63
      %s64 = sphi 0, %s61
      %s65 = sphi 0, %s64
      %s81 = sphi 0, %s65
      %s87 = sphi 0, %s89
      %s90 = sphi 0, %s87
      %s91 = sphi 0, %s90
      %s107 = sphi 0, %s91
      %s111 = sphi 0, %s111
      %s113 = sphi 0, %s111
      %s114 = sphi 0, %s113
      %s128 = sphi 0, %s114
      %s132 = sphi 0, %s132
      %s134 = sphi 0, %s132
      %s135 = sphi 0, %s134
      %s149 = sphi 0, %s135
      %s155 = sphi 0, %s157
      %s158 = sphi 0, %s155
      %s159 = sphi 0, %s158
      %s175 = sphi 0, %s159
      %s181 = sphi 0, %s183
      %s184 = sphi 0, %s181
      %s185 = sphi 0, %s184
      %s201 = sphi 0, %s185
    $region4: #{tpu_custom_call.1} parent=1 // loop_header_branch
      %28 = sbr.rel (%p26) target = $region8
    $region5: #{tpu_custom_call.1} parent=1 // loop_body
      %s30 = ssub.s32 %s25, 1
      %s31 = ssub.s32 %s25, 2
      %s32 = sadd.s32 %s25, 1
      %s33 = ssub.s32 %s25, %s32
      %p34 = scmp.eq.s32.totalorder %s33, 0
      %s36 = sadd.s32 %s35, 1
      %s37 = scalar_select %p34, %s35, %s36
      %p40 = pneg %p34
      %p41 = scmp.eq.s32.totalorder %s25, 1
      %p42 = por %p40, %p41
      %p43 = scmp.ne.s32.totalorder %s35, %s38
      %p44 = scmp.eq.s32.totalorder %s25, 0
      %p45 = por %p43, %p44
      %p46 = scmp.ne.s32.totalorder %s35, %s38
      %p47 = scmp.eq.s32.totalorder %s30, 1
      %p48 = por %p46, %p47
      %p49 = scmp.ne.s32.totalorder %s38, %s39
      %p50 = scmp.eq.s32.totalorder %s30, 0
      %p51 = por %p49, %p50
      %p52 = scmp.ne.s32.totalorder %s38, %s39
      %p53 = scmp.eq.s32.totalorder %s31, 1
      %p54 = por %p52, %p53
      %p56 = scmp.ne.s32.totalorder %s39, %s55
      %p57 = scmp.eq.s32.totalorder %s31, 0
      %p58 = por %p56, %p57
      %s59 = ssub.s32 %s25, %s32
      %p60 = scmp.eq.s32.totalorder %s59, 0
      %s62 = sadd.s32 %s61, 1
      %s63 = scalar_select %p60, %s61, %s62
      %p66 = pneg %p60
      %p67 = scmp.eq.s32.totalorder %s25, 1
      %p68 = por %p66, %p67
      %p69 = scmp.ne.s32.totalorder %s61, %s64
      %p70 = scmp.eq.s32.totalorder %s25, 0
      %p71 = por %p69, %p70
      %p72 = scmp.ne.s32.totalorder %s61, %s64
      %p73 = scmp.eq.s32.totalorder %s30, 1
      %p74 = por %p72, %p73
      %p75 = scmp.ne.s32.totalorder %s64, %s65
      %p76 = scmp.eq.s32.totalorder %s30, 0
      %p77 = por %p75, %p76
      %p78 = scmp.ne.s32.totalorder %s64, %s65
      %p79 = scmp.eq.s32.totalorder %s31, 1
      %p80 = por %p78, %p79
      %p82 = scmp.ne.s32.totalorder %s65, %s81
      %p83 = scmp.eq.s32.totalorder %s31, 0
      %p84 = por %p82, %p83
      %s85 = ssub.s32 %s25, %s32
      %p86 = scmp.eq.s32.totalorder %s85, 0
      %s88 = sadd.s32 %s87, 1
      %s89 = scalar_select %p86, %s87, %s88
      %p92 = pneg %p86
      %p93 = scmp.eq.s32.totalorder %s25, 1
      %p94 = por %p92, %p93
      %p95 = scmp.ne.s32.totalorder %s87, %s90
      %p96 = scmp.eq.s32.totalorder %s25, 0
      %p97 = por %p95, %p96
      %p98 = scmp.ne.s32.totalorder %s87, %s90
      %p99 = scmp.eq.s32.totalorder %s30, 1
      %p100 = por %p98, %p99
      %p101 = scmp.ne.s32.totalorder %s90, %s91
      %p102 = scmp.eq.s32.totalorder %s30, 0
      %p103 = por %p101, %p102
      %p104 = scmp.ne.s32.totalorder %s90, %s91
      %p105 = scmp.eq.s32.totalorder %s31, 1
      %p106 = por %p104, %p105
      %p108 = scmp.ne.s32.totalorder %s91, %s107
      %p109 = scmp.eq.s32.totalorder %s31, 0
      %p110 = por %p108, %p109
      %s112 = sadd.s32 %s111, 1
      %p115 = scmp.eq.s32.totalorder %s25, 1
      %p116 = scmp.ne.s32.totalorder %s111, %s113
      %p117 = scmp.eq.s32.totalorder %s25, 0
      %p118 = por %p116, %p117
      %p119 = scmp.ne.s32.totalorder %s111, %s113
      %p120 = scmp.eq.s32.totalorder %s30, 1
      %p121 = por %p119, %p120
      %p122 = scmp.ne.s32.totalorder %s113, %s114
      %p123 = scmp.eq.s32.totalorder %s30, 0
      %p124 = por %p122, %p123
      %p125 = scmp.ne.s32.totalorder %s113, %s114
      %p126 = scmp.eq.s32.totalorder %s31, 1
      %p127 = por %p125, %p126
      %p129 = scmp.ne.s32.totalorder %s114, %s128
      %p130 = scmp.eq.s32.totalorder %s31, 0
      %p131 = por %p129, %p130
      %s133 = sadd.s32 %s132, 1
      %p136 = scmp.eq.s32.totalorder %s25, 1
      %p137 = scmp.ne.s32.totalorder %s132, %s134
      %p138 = scmp.eq.s32.totalorder %s25, 0
      %p139 = por %p137, %p138
      %p140 = scmp.ne.s32.totalorder %s132, %s134
      %p141 = scmp.eq.s32.totalorder %s30, 1
      %p142 = por %p140, %p141
      %p143 = scmp.ne.s32.totalorder %s134, %s135
      %p144 = scmp.eq.s32.totalorder %s30, 0
      %p145 = por %p143, %p144
      %p146 = scmp.ne.s32.totalorder %s134, %s135
      %p147 = scmp.eq.s32.totalorder %s31, 1
      %p148 = por %p146, %p147
      %p150 = scmp.ne.s32.totalorder %s135, %s149
      %p151 = scmp.eq.s32.totalorder %s31, 0
      %p152 = por %p150, %p151
      %s153 = ssub.s32 %s25, %s32
      %p154 = scmp.eq.s32.totalorder %s153, 0
      %s156 = sadd.s32 %s155, 1
      %s157 = scalar_select %p154, %s155, %s156
      %p160 = pneg %p154
      %p161 = scmp.eq.s32.totalorder %s25, 1
      %p162 = por %p160, %p161
      %p163 = scmp.ne.s32.totalorder %s155, %s158
      %p164 = scmp.eq.s32.totalorder %s25, 0
      %p165 = por %p163, %p164
      %p166 = scmp.ne.s32.totalorder %s155, %s158
      %p167 = scmp.eq.s32.totalorder %s30, 1
      %p168 = por %p166, %p167
      %p169 = scmp.ne.s32.totalorder %s158, %s159
      %p170 = scmp.eq.s32.totalorder %s30, 0
      %p171 = por %p169, %p170
      %p172 = scmp.ne.s32.totalorder %s158, %s159
      %p173 = scmp.eq.s32.totalorder %s31, 1
      %p174 = por %p172, %p173
      %p176 = scmp.ne.s32.totalorder %s159, %s175
      %p177 = scmp.eq.s32.totalorder %s31, 0
      %p178 = por %p176, %p177
      %s179 = ssub.s32 %s25, %s32
      %p180 = scmp.eq.s32.totalorder %s179, 0
      %s182 = sadd.s32 %s181, 1
      %s183 = scalar_select %p180, %s181, %s182
      %p186 = pneg %p180
      %p187 = scmp.eq.s32.totalorder %s25, 1
      %p188 = por %p186, %p187
      %p189 = scmp.ne.s32.totalorder %s181, %s184
      %p190 = scmp.eq.s32.totalorder %s25, 0
      %p191 = por %p189, %p190
      %p192 = scmp.ne.s32.totalorder %s181, %s184
      %p193 = scmp.eq.s32.totalorder %s30, 1
      %p194 = por %p192, %p193
      %p195 = scmp.ne.s32.totalorder %s184, %s185
      %p196 = scmp.eq.s32.totalorder %s30, 0
      %p197 = por %p195, %p196
      %p198 = scmp.ne.s32.totalorder %s184, %s185
      %p199 = scmp.eq.s32.totalorder %s31, 1
      %p200 = por %p198, %p199
      %p202 = scmp.ne.s32.totalorder %s185, %s201
      %p203 = scmp.eq.s32.totalorder %s31, 0
      %p204 = por %p202, %p203
      %p205 = scmp.le.s32.totalorder 1, %s25
      %p206 = scmp.lt.s32.totalorder %s25, 3
      %p207 = pnand %p205, %p206
      %p208 = pneg %p207
      // Predicated region
      $region9: #{tpu_custom_call.1} parent=5 // pred_check
        _
      $region10: #{tpu_custom_call.1} parent=5 // pred_check_branch
        %210 = sbr.rel (%p207) target = $region12
      $region11: #{tpu_custom_call.1} parent=5 // pred_region
        %s211 = ssub.s32 %s25, 1
        // Predicated region
        $region13: #{tpu_custom_call.1} parent=11 // pred_check
          %p212 = pneg %p124
        $region14: #{tpu_custom_call.1} parent=11 // pred_check_branch
          %214 = sbr.rel (%p212) target = $region16
        $region15: #{tpu_custom_call.1} parent=11 // pred_region
          %s216 = ssub.s32 2048, 2048
          %217 = vsyncadd [#allocation6], %s216
          %s218 = sshll.u32 [#allocation7], 4
          %s219 = int_to_ptr.vmem [resolvable:$true] %s218
          %224 = dma.hbm_to_vmem [thread:$0]  %s3, 2048, %s219, [#allocation6], 128, 128, 8
        $region16: #{tpu_custom_call.1} parent=11 // pred_fallthru
          _
        // Predicated region
        $region17: #{tpu_custom_call.1} parent=11 // pred_check
          %p225 = pneg %p145
        $region18: #{tpu_custom_call.1} parent=11 // pred_check_branch
          %227 = sbr.rel (%p225) target = $region20
        $region19: #{tpu_custom_call.1} parent=11 // pred_region
          _
        $region20: #{tpu_custom_call.1} parent=11 // pred_fallthru
          _
      $region12: #{tpu_custom_call.1} parent=5 // pred_fallthru
        _
      %p228 = scmp.lt.s32.totalorder %s25, 2
      // Predicated region
      $region21: #{tpu_custom_call.1} parent=5 // pred_check
        %p229 = pneg %p228
      $region22: #{tpu_custom_call.1} parent=5 // pred_check_branch
        %231 = sbr.rel (%p229) target = $region24
      $region23: #{tpu_custom_call.1} parent=5 // pred_region
        // Predicated region
        $region25: #{tpu_custom_call.1} parent=23 // pred_check
          %p232 = pneg %p45
        $region26: #{tpu_custom_call.1} parent=23 // pred_check_branch
          %234 = sbr.rel (%p232) target = $region28
        $region27: #{tpu_custom_call.1} parent=23 // pred_region
          %s235 = sand.u32 %s35, 1
          %s236 = scalar_lea.sflag [#allocation3], %s235
          %s237 = sand.u32 %s35, 1
          %s238 = smul.addr %s237, 24
          %s239 = scalar_lea.vmem [#allocation2], %s238
          %s240 = smul.u32 3, %s25
          %s242 = ssub.s32 384, 384
          %243 = vsyncadd %s236, %s242
          %s244 = smul.addr %s240, 128
          %s245 = scalar_lea.hbm %s0, %s244
          %s246 = sshll.u32 %s239, 4
          %s247 = int_to_ptr.vmem [resolvable:$true] %s246
          %252 = dma.hbm_to_vmem [thread:$0]  %s245, 384, %s247, %s236, 128, 128, 8
        $region28: #{tpu_custom_call.1} parent=23 // pred_fallthru
          _
        // Predicated region
        $region29: #{tpu_custom_call.1} parent=23 // pred_check
          %p253 = pneg %p71
        $region30: #{tpu_custom_call.1} parent=23 // pred_check_branch
          %255 = sbr.rel (%p253) target = $region32
        $region31: #{tpu_custom_call.1} parent=23 // pred_region
          %s256 = sand.u32 %s25, 1
          %s257 = scalar_lea.sflag [#allocation6], %s256
          %s258 = sand.u32 %s61, 1
          %s259 = smul.addr %s258, 48
          %s260 = scalar_lea.vmem [#allocation5], %s259
          %s261 = smul.u32 3, %s25
          %s263 = ssub.s32 768, 768
          %264 = vsyncadd %s257, %s263
          %s265 = smul.addr %s261, 2
          %s266 = smul.addr %s265, 128
          %s267 = scalar_lea.hbm %s1, %s266
          %s268 = sshll.u32 %s260, 4
          %s269 = int_to_ptr.vmem [resolvable:$true] %s268
          %274 = dma.hbm_to_vmem [thread:$0]  %s267, 768, %s269, %s257, 128, 128, 8
        $region32: #{tpu_custom_call.1} parent=23 // pred_fallthru
          _
        // Predicated region
        $region33: #{tpu_custom_call.1} parent=23 // pred_check
          %p275 = pneg %p97
        $region34: #{tpu_custom_call.1} parent=23 // pred_check_branch
          %277 = sbr.rel (%p275) target = $region36
        $region35: #{tpu_custom_call.1} parent=23 // pred_region
          %s278 = smul.u32 3, %s25
          %p279 = scmp.lt.s32.totalorder %s278, 5
          %s280 = scalar_select %p279, %s278, 5
          %s281 = scalar_lea.vmem %s2, %s280
          %s282 = smul.u32 3, %s25
        $region36: #{tpu_custom_call.1} parent=23 // pred_fallthru
          _
      $region24: #{tpu_custom_call.1} parent=5 // pred_fallthru
        _
      %p283 = scmp.le.s32.totalorder 1, %s25
      %p284 = scmp.lt.s32.totalorder %s25, 3
      %p285 = pnand %p283, %p284
      %p286 = pneg %p285
      // Predicated region
      $region37: #{tpu_custom_call.1} parent=5 // pred_check
        _
      $region38: #{tpu_custom_call.1} parent=5 // pred_check_branch
        %288 = sbr.rel (%p285) target = $region40
      $region39: #{tpu_custom_call.1} parent=5 // pred_region
        %s289 = ssub.s32 %s25, 1
        %s290 = sand.u32 %s38, 1
        %s291 = scalar_lea.sflag [#allocation3], %s290
        %s292 = sand.u32 %s38, 1
        %s293 = smul.addr %s292, 24
        %s294 = scalar_lea.vmem [#allocation2], %s293
        // Predicated region
        $region41: #{tpu_custom_call.1} parent=39 // pred_check
          %p295 = pneg %p51
        $region42: #{tpu_custom_call.1} parent=39 // pred_check_branch
          %297 = sbr.rel (%p295) target = $region44
        $region43: #{tpu_custom_call.1} parent=39 // pred_region
          %298 = dma.done %s291, 384
        $region44: #{tpu_custom_call.1} parent=39 // pred_fallthru
          _
        %s299 = sand.u32 %s30, 1
        %s300 = scalar_lea.sflag [#allocation6], %s299
        %s301 = sand.u32 %s64, 1
        %s302 = smul.addr %s301, 48
        %s303 = scalar_lea.vmem [#allocation5], %s302
        // Predicated region
        $region45: #{tpu_custom_call.1} parent=39 // pred_check
          %p304 = pneg %p77
        $region46: #{tpu_custom_call.1} parent=39 // pred_check_branch
          %306 = sbr.rel (%p304) target = $region48
        $region47: #{tpu_custom_call.1} parent=39 // pred_region
          %307 = dma.done %s300, 768
        $region48: #{tpu_custom_call.1} parent=39 // pred_fallthru
          _
        // Predicated region
        $region49: #{tpu_custom_call.1} parent=39 // pred_check
          %p308 = pneg %p124
        $region50: #{tpu_custom_call.1} parent=39 // pred_check_branch
          %310 = sbr.rel (%p308) target = $region52
        $region51: #{tpu_custom_call.1} parent=39 // pred_region
          %311 = dma.done [#allocation6], 2048
        $region52: #{tpu_custom_call.1} parent=39 // pred_fallthru
          _
        %s312 = sand.u32 %s38, 1
        %s313 = scalar_lea.sflag [#allocation3], %s312
        %s314 = sand.u32 %s38, 1
        %s315 = smul.addr %s314, 24
        %s316 = scalar_lea.vmem [#allocation2], %s315
        %p317 = pneg %p51
        %p318 = pneg %p48
        %s319 = sand.u32 %s30, 1
        %s320 = scalar_lea.sflag [#allocation6], %s319
        %s321 = sand.u32 %s64, 1
        %s322 = smul.addr %s321, 48
        %s323 = scalar_lea.vmem [#allocation5], %s322
        %p324 = pneg %p77
        %p325 = pneg %p74
        %s326 = smul.u32 3, %s30
        %p327 = scmp.lt.s32.totalorder %s326, 5
        %s328 = scalar_select %p327, %s326, 5
        %s329 = scalar_lea.vmem %s2, %s328
        %p330 = pneg %p103
        %p331 = pneg %p100
        %p332 = pneg %p124
        %p333 = pneg %p121
        %p334 = pneg %p145
        %p335 = pneg %p142
        %p336 = pneg %p171
        %p337 = pneg %p168
        %s338 = sand.u32 %s158, 1
        %s339 = scalar_lea.sflag [#allocation4], %s338
        %s340 = sand.u32 %s158, 1
        %s341 = smul.addr %s340, 24
        %s342 = scalar_lea.vmem [#allocation8], %s341
        %p343 = pneg %p197
        %p344 = pneg %p194
        %s345 = sand.u32 %s184, 1
        %s346 = scalar_lea.sflag [#allocation10], %s345
        %s347 = sand.u32 %s184, 1
        %s348 = smul.addr %s347, 24
        %s349 = scalar_lea.vmem [#allocation9], %s348
        %s350 = smul.u32 3, %s30
        %s351 = smul.u32 3, %s30
        %s352 = smul.u32 3, %s30
        %p353 = scmp.lt.s32.totalorder %s352, 5
        %s354 = scalar_select %p353, %s352, 5
        %s355 = scalar_lea.vmem %s2, %s354
        %s356 = smul.u32 3, %s30
        %s357 = smul.u32 3, %s30
        %s358 = smul.u32 3, %s30
        %v359 = vld [vmem:[%s294] sm:$0xff]
        %v360 = vld [vmem:[%s294 + $0x8] sm:$0xff]
        %v361 = vld [vmem:[%s294 + $0x10] sm:$0xff]
        %v362 = vld [vmem:[%s303] sm:$0xff]
        %v363 = vld [vmem:[%s303 + $0x8] sm:$0xff]
        %v364 = vld [vmem:[%s303 + $0x10] sm:$0xff]
        %v365 = vld [vmem:[%s303 + $0x18] sm:$0xff]
        %v366 = vld [vmem:[%s303 + $0x20] sm:$0xff]
        %v367 = vld [vmem:[%s303 + $0x28] sm:$0xff]
        %v368 = vld [vmem:[#allocation7] sm:$0xff]
        %v369 = vld [vmem:[#allocation7 + $0x8] sm:$0xff]
        %v370 = vld [vmem:[#allocation7 + $0x10] sm:$0xff]
        %v371 = vld [vmem:[#allocation7 + $0x18] sm:$0xff]
        %v372 = vld [vmem:[%s4] sm:$0x1]
        %v374 = vlaneseq
        %v375 = vshrl.u32 %v374, 7
        %v376 = vsub.s32 0, %v375
        %v377 = vrot.slane %v372, %v376
        %vm379 = vcmask 261120
        %v381 = vsel %vm379, %v359, 0
        %v384 = vsel %vm379, %v360, 0
        %v387 = vsel %vm379, %v361, 0
        %389 = vmatprep.subr.mxu0 0.0
        %390 = vmatpush1.msra.mxu0 %v368
        %391 = vmatprep.subr.mxu0 0.0
        %392 = vmatpush1.msra.mxu0 %v369
        %393 = vmatprep.subr.mxu0 0.0
        %394 = vmatpush1.msra.mxu0 %v370
        %395 = vmatprep.subr.mxu0 0.0
        %396 = vmatpush1.msra.mxu0 %v371
        %397 = vmatprep.subr.mxu0 0.0
        %398 = vmatpush1.msra.mxu0 0.0
        %399 = vmatprep.subr.mxu0 0.0
        %400 = vmatpush1.msra.mxu0 0.0
        %401 = vmatprep.subr.mxu0 0.0
        %402 = vmatpush1.msra.mxu0 0.0
        %403 = vmatprep.subr.mxu0 0.0
        %404 = vmatpush1.msra.mxu0 0.0
        %405 = vmatprep.subr.mxu0 0.0
        %406 = vmatpush1.msra.mxu0 0.0
        %407 = vmatprep.subr.mxu0 0.0
        %408 = vmatpush1.msra.mxu0 0.0
        %409 = vmatprep.subr.mxu0 0.0
        %410 = vmatpush1.msra.mxu0 0.0
        %411 = vmatprep.subr.mxu0 0.0
        %412 = vmatpush1.msra.mxu0 0.0
        %413 = vmatprep.subr.mxu0 0.0
        %414 = vmatpush1.msra.mxu0 0.0
        %415 = vmatprep.subr.mxu0 0.0
        %416 = vmatpush1.msra.mxu0 0.0
        %417 = vmatprep.subr.mxu0 0.0
        %418 = vmatpush1.msra.mxu0 0.0
        %419 = vmatprep.subr.mxu0 0.0
        %420 = vmatpush1.msra.mxu0 0.0
        %421 = vmatprep.subr.mxu0 0.0
        %422 = vmatpush1.msra.mxu0 0.0
        %423 = vmatprep.subr.mxu0 0.0
        %424 = vmatpush1.msra.mxu0 0.0
        %425 = vmatprep.subr.mxu0 0.0
        %426 = vmatpush1.msra.mxu0 0.0
        %427 = vmatprep.subr.mxu0 0.0
        %428 = vmatpush1.msra.mxu0 0.0
        %429 = vmatprep.subr.mxu0 0.0
        %430 = vmatpush1.msra.mxu0 0.0
        %431 = vmatprep.subr.mxu0 0.0
        %432 = vmatpush1.msra.mxu0 0.0
        %433 = vmatprep.subr.mxu0 0.0
        %434 = vmatpush1.msra.mxu0 0.0
        %435 = vmatprep.subr.mxu0 0.0
        %436 = vmatpush1.msra.mxu0 0.0
        %437 = vmatprep.subr.mxu0 0.0
        %438 = vmatpush1.msra.mxu0 0.0
        %439 = vmatprep.subr.mxu0 0.0
        %440 = vmatpush1.msra.mxu0 0.0
        %441 = vmatprep.subr.mxu0 0.0
        %442 = vmatpush1.msra.mxu0 0.0
        %443 = vmatprep.subr.mxu0 0.0
        %444 = vmatpush1.msra.mxu0 0.0
        %445 = vmatprep.subr.mxu0 0.0
        %446 = vmatpush1.msra.mxu0 0.0
        %447 = vmatprep.subr.mxu0 0.0
        %448 = vmatpush1.msra.mxu0 0.0
        %449 = vmatprep.subr.mxu0 0.0
        %450 = vmatpush1.msra.mxu0 0.0
        %451 = vmatprep.subr.mxu0 0.0
        %452 = vmatpush1.msra.mxu0 0.0
        %453 = vmatprep.mubr.f32.mxu0 0.0
        %454 = vmatmul.mubr.f32.gmra.mrb[0].mxu0 %v381
        %v455 = vpop.f32.mrb[0].mxu0
        %v456 = vadd.f32 %v377, %v455
        %v457 = vpop.f32.mrb[0].mxu0
        %458 = vmatprep.mubr.f32.mxu0 0.0
        %459 = vmatmul.mubr.f32.gmra.mrb[0].mxu0 %v384
        %v460 = vpop.f32.mrb[0].mxu0
        %v461 = vadd.f32 %v377, %v460
        %v462 = vpop.f32.mrb[0].mxu0
        %463 = vmatprep.mubr.f32.mxu0 0.0
        %464 = vmatmul.mubr.f32.gmra.mrb[0].mxu0 %v387
        %v465 = vpop.f32.mrb[0].mxu0
        %v466 = vadd.f32 %v377, %v465
        %v467 = vpop.f32.mrb[0].mxu0
        %468 = vdwg.mxu0
        %s469 = scalar_lea.vmem [#allocation7], 32
        %v470 = vld [vmem:[%s469] sm:$0xff]
        %v471 = vld [vmem:[%s469 + $0x8] sm:$0xff]
        %v472 = vld [vmem:[%s469 + $0x10] sm:$0xff]
        %v473 = vld [vmem:[%s469 + $0x18] sm:$0xff]
        %s474 = scalar_lea.vmem %s4, 1
        %v475 = vld [vmem:[%s474] sm:$0x1]
        %v477 = vlaneseq
        %v478 = vshrl.u32 %v477, 7
        %v479 = vsub.s32 0, %v478
        %v480 = vrot.slane %v475, %v479
        %v483 = vsel %vm379, %v362, 0
        %v486 = vsel %vm379, %v363, 0
        %v489 = vsel %vm379, %v364, 0
        %v492 = vsel %vm379, %v365, 0
        %v495 = vsel %vm379, %v366, 0
        %v498 = vsel %vm379, %v367, 0
        %500 = vmatprep.subr.mxu0 0.0
        %501 = vmatpush1.msra.mxu0 %v470
        %502 = vmatprep.subr.mxu0 0.0
        %503 = vmatpush1.msra.mxu0 %v471
        %504 = vmatprep.subr.mxu0 0.0
        %505 = vmatpush1.msra.mxu0 %v472
        %506 = vmatprep.subr.mxu0 0.0
        %507 = vmatpush1.msra.mxu0 %v473
        %508 = vmatprep.subr.mxu0 0.0
        %509 = vmatpush1.msra.mxu0 0.0
        %510 = vmatprep.subr.mxu0 0.0
        %511 = vmatpush1.msra.mxu0 0.0
        %512 = vmatprep.subr.mxu0 0.0
        %513 = vmatpush1.msra.mxu0 0.0
        %514 = vmatprep.subr.mxu0 0.0
        %515 = vmatpush1.msra.mxu0 0.0
        %516 = vmatprep.subr.mxu0 0.0
        %517 = vmatpush1.msra.mxu0 0.0
        %518 = vmatprep.subr.mxu0 0.0
        %519 = vmatpush1.msra.mxu0 0.0
        %520 = vmatprep.subr.mxu0 0.0
        %521 = vmatpush1.msra.mxu0 0.0
        %522 = vmatprep.subr.mxu0 0.0
        %523 = vmatpush1.msra.mxu0 0.0
        %524 = vmatprep.subr.mxu0 0.0
        %525 = vmatpush1.msra.mxu0 0.0
        %526 = vmatprep.subr.mxu0 0.0
        %527 = vmatpush1.msra.mxu0 0.0
        %528 = vmatprep.subr.mxu0 0.0
        %529 = vmatpush1.msra.mxu0 0.0
        %530 = vmatprep.subr.mxu0 0.0
        %531 = vmatpush1.msra.mxu0 0.0
        %532 = vmatprep.subr.mxu0 0.0
        %533 = vmatpush1.msra.mxu0 0.0
        %534 = vmatprep.subr.mxu0 0.0
        %535 = vmatpush1.msra.mxu0 0.0
        %536 = vmatprep.subr.mxu0 0.0
        %537 = vmatpush1.msra.mxu0 0.0
        %538 = vmatprep.subr.mxu0 0.0
        %539 = vmatpush1.msra.mxu0 0.0
        %540 = vmatprep.subr.mxu0 0.0
        %541 = vmatpush1.msra.mxu0 0.0
        %542 = vmatprep.subr.mxu0 0.0
        %543 = vmatpush1.msra.mxu0 0.0
        %544 = vmatprep.subr.mxu0 0.0
        %545 = vmatpush1.msra.mxu0 0.0
        %546 = vmatprep.subr.mxu0 0.0
        %547 = vmatpush1.msra.mxu0 0.0
        %548 = vmatprep.subr.mxu0 0.0
        %549 = vmatpush1.msra.mxu0 0.0
        %550 = vmatprep.subr.mxu0 0.0
        %551 = vmatpush1.msra.mxu0 0.0
        %552 = vmatprep.subr.mxu0 0.0
        %553 = vmatpush1.msra.mxu0 0.0
        %554 = vmatprep.subr.mxu0 0.0
        %555 = vmatpush1.msra.mxu0 0.0
        %556 = vmatprep.subr.mxu0 0.0
        %557 = vmatpush1.msra.mxu0 0.0
        %558 = vmatprep.subr.mxu0 0.0
        %559 = vmatpush1.msra.mxu0 0.0
        %560 = vmatprep.subr.mxu0 0.0
        %561 = vmatpush1.msra.mxu0 0.0
        %562 = vmatprep.subr.mxu0 0.0
        %563 = vmatpush1.msra.mxu0 0.0
        %564 = vmatprep.mubr.f32.mxu0 0.0
        %565 = vmatmul.mubr.f32.gmra.mrb[0].mxu0 %v483
        %v566 = vpop.f32.mrb[0].mxu0
        %v567 = vadd.f32 %v480, %v566
        %v568 = vpop.f32.mrb[0].mxu0
        %569 = vmatprep.mubr.f32.mxu0 0.0
        %570 = vmatmul.mubr.f32.gmra.mrb[0].mxu0 %v486
        %v571 = vpop.f32.mrb[0].mxu0
        %v572 = vadd.f32 %v480, %v571
        %v573 = vpop.f32.mrb[0].mxu0
        %574 = vmatprep.mubr.f32.mxu0 0.0
        %575 = vmatmul.mubr.f32.gmra.mrb[0].mxu0 %v489
        %v576 = vpop.f32.mrb[0].mxu0
        %v577 = vadd.f32 %v480, %v576
        %v578 = vpop.f32.mrb[0].mxu0
        %579 = vmatprep.mubr.f32.mxu0 0.0
        %580 = vmatmul.mubr.f32.gmra.mrb[0].mxu0 %v492
        %v581 = vpop.f32.mrb[0].mxu0
        %v582 = vadd.f32 %v480, %v581
        %v583 = vpop.f32.mrb[0].mxu0
        %584 = vmatprep.mubr.f32.mxu0 0.0
        %585 = vmatmul.mubr.f32.gmra.mrb[0].mxu0 %v495
        %v586 = vpop.f32.mrb[0].mxu0
        %v587 = vadd.f32 %v480, %v586
        %v588 = vpop.f32.mrb[0].mxu0
        %589 = vmatprep.mubr.f32.mxu0 0.0
        %590 = vmatmul.mubr.f32.gmra.mrb[0].mxu0 %v498
        %v591 = vpop.f32.mrb[0].mxu0
        %v592 = vadd.f32 %v480, %v591
        %v593 = vpop.f32.mrb[0].mxu0
        %594 = vdwg.mxu0
        %s595 = scalar_lea.vmem [#allocation7], 64
        %v596 = vld [vmem:[%s595] sm:$0xff]
        %v597 = vld [vmem:[%s595 + $0x8] sm:$0xff]
        %v598 = vld [vmem:[%s595 + $0x10] sm:$0xff]
        %v599 = vld [vmem:[%s595 + $0x18] sm:$0xff]
        %s600 = scalar_lea.vmem %s4, 2
        %v601 = vld [vmem:[%s600] sm:$0x1]
        %v603 = vlaneseq
        %v604 = vshrl.u32 %v603, 7
        %v605 = vsub.s32 0, %v604
        %v606 = vrot.slane %v601, %v605
        %608 = vmatprep.subr.mxu0 0.0
        %609 = vmatpush1.msra.mxu0 %v596
        %610 = vmatprep.subr.mxu0 0.0
        %611 = vmatpush1.msra.mxu0 %v597
        %612 = vmatprep.subr.mxu0 0.0
        %613 = vmatpush1.msra.mxu0 %v598
        %614 = vmatprep.subr.mxu0 0.0
        %615 = vmatpush1.msra.mxu0 %v599
        %616 = vmatprep.subr.mxu0 0.0
        %617 = vmatpush1.msra.mxu0 0.0
        %618 = vmatprep.subr.mxu0 0.0
        %619 = vmatpush1.msra.mxu0 0.0
        %620 = vmatprep.subr.mxu0 0.0
        %621 = vmatpush1.msra.mxu0 0.0
        %622 = vmatprep.subr.mxu0 0.0
        %623 = vmatpush1.msra.mxu0 0.0
        %624 = vmatprep.subr.mxu0 0.0
        %625 = vmatpush1.msra.mxu0 0.0
        %626 = vmatprep.subr.mxu0 0.0
        %627 = vmatpush1.msra.mxu0 0.0
        %628 = vmatprep.subr.mxu0 0.0
        %629 = vmatpush1.msra.mxu0 0.0
        %630 = vmatprep.subr.mxu0 0.0
        %631 = vmatpush1.msra.mxu0 0.0
        %632 = vmatprep.subr.mxu0 0.0
        %633 = vmatpush1.msra.mxu0 0.0
        %634 = vmatprep.subr.mxu0 0.0
        %635 = vmatpush1.msra.mxu0 0.0
        %636 = vmatprep.subr.mxu0 0.0
        %637 = vmatpush1.msra.mxu0 0.0
        %638 = vmatprep.subr.mxu0 0.0
        %639 = vmatpush1.msra.mxu0 0.0
        %640 = vmatprep.subr.mxu0 0.0
        %641 = vmatpush1.msra.mxu0 0.0
        %642 = vmatprep.subr.mxu0 0.0
        %643 = vmatpush1.msra.mxu0 0.0
        %644 = vmatprep.subr.mxu0 0.0
        %645 = vmatpush1.msra.mxu0 0.0
        %646 = vmatprep.subr.mxu0 0.0
        %647 = vmatpush1.msra.mxu0 0.0
        %648 = vmatprep.subr.mxu0 0.0
        %649 = vmatpush1.msra.mxu0 0.0
        %650 = vmatprep.subr.mxu0 0.0
        %651 = vmatpush1.msra.mxu0 0.0
        %652 = vmatprep.subr.mxu0 0.0
        %653 = vmatpush1.msra.mxu0 0.0
        %654 = vmatprep.subr.mxu0 0.0
        %655 = vmatpush1.msra.mxu0 0.0
        %656 = vmatprep.subr.mxu0 0.0
        %657 = vmatpush1.msra.mxu0 0.0
        %658 = vmatprep.subr.mxu0 0.0
        %659 = vmatpush1.msra.mxu0 0.0
        %660 = vmatprep.subr.mxu0 0.0
        %661 = vmatpush1.msra.mxu0 0.0
        %662 = vmatprep.subr.mxu0 0.0
        %663 = vmatpush1.msra.mxu0 0.0
        %664 = vmatprep.subr.mxu0 0.0
        %665 = vmatpush1.msra.mxu0 0.0
        %666 = vmatprep.subr.mxu0 0.0
        %667 = vmatpush1.msra.mxu0 0.0
        %668 = vmatprep.subr.mxu0 0.0
        %669 = vmatpush1.msra.mxu0 0.0
        %670 = vmatprep.subr.mxu0 0.0
        %671 = vmatpush1.msra.mxu0 0.0
        %672 = vmatprep.mubr.f32.mxu0 0.0
        %673 = vmatmul.mubr.f32.gmra.mrb[0].mxu0 %v483
        %v674 = vpop.f32.mrb[0].mxu0
        %v675 = vadd.f32 %v606, %v674
        %v676 = vpop.f32.mrb[0].mxu0
        %677 = vmatprep.mubr.f32.mxu0 0.0
        %678 = vmatmul.mubr.f32.gmra.mrb[0].mxu0 %v486
        %v679 = vpop.f32.mrb[0].mxu0
        %v680 = vadd.f32 %v606, %v679
        %v681 = vpop.f32.mrb[0].mxu0
        %682 = vmatprep.mubr.f32.mxu0 0.0
        %683 = vmatmul.mubr.f32.gmra.mrb[0].mxu0 %v489
        %v684 = vpop.f32.mrb[0].mxu0
        %v685 = vadd.f32 %v606, %v684
        %v686 = vpop.f32.mrb[0].mxu0
        %687 = vmatprep.mubr.f32.mxu0 0.0
        %688 = vmatmul.mubr.f32.gmra.mrb[0].mxu0 %v492
        %v689 = vpop.f32.mrb[0].mxu0
        %v690 = vadd.f32 %v606, %v689
        %v691 = vpop.f32.mrb[0].mxu0
        %692 = vmatprep.mubr.f32.mxu0 0.0
        %693 = vmatmul.mubr.f32.gmra.mrb[0].mxu0 %v495
        %v694 = vpop.f32.mrb[0].mxu0
        %v695 = vadd.f32 %v606, %v694
        %v696 = vpop.f32.mrb[0].mxu0
        %697 = vmatprep.mubr.f32.mxu0 0.0
        %698 = vmatmul.mubr.f32.gmra.mrb[0].mxu0 %v498
        %v699 = vpop.f32.mrb[0].mxu0
        %v700 = vadd.f32 %v606, %v699
        %v701 = vpop.f32.mrb[0].mxu0
        %702 = vdwg.mxu0
        %v704 = vsel %vm379, %v456, 0
        %v707 = vsel %vm379, %v567, 0
        %v710 = vsel %vm379, %v572, 0
        %712 = vmatprep.subr.mxu0 0.0
        %713 = vmatpush1.xpose.msra.mxu0 %v707
        %714 = vmatprep.subr.mxu0 0.0
        %715 = vmatpush1.xpose.msra.mxu0 %v710
        %716 = vmatprep.subr.mxu0 0.0
        %717 = vmatpush1.xpose.msra.mxu0 0.0
        %718 = vmatprep.subr.mxu0 0.0
        %719 = vmatpush1.xpose.msra.mxu0 0.0
        %720 = vmatprep.subr.mxu0 0.0
        %721 = vmatpush1.xpose.msra.mxu0 0.0
        %722 = vmatprep.subr.mxu0 0.0
        %723 = vmatpush1.xpose.msra.mxu0 0.0
        %724 = vmatprep.subr.mxu0 0.0
        %725 = vmatpush1.xpose.msra.mxu0 0.0
        %726 = vmatprep.subr.mxu0 0.0
        %727 = vmatpush1.xpose.msra.mxu0 0.0
        %728 = vmatprep.subr.mxu0 0.0
        %729 = vmatpush1.xpose.msra.mxu0 0.0
        %730 = vmatprep.subr.mxu0 0.0
        %731 = vmatpush1.xpose.msra.mxu0 0.0
        %732 = vmatprep.subr.mxu0 0.0
        %733 = vmatpush1.xpose.msra.mxu0 0.0
        %734 = vmatprep.subr.mxu0 0.0
        %735 = vmatpush1.xpose.msra.mxu0 0.0
        %736 = vmatprep.subr.mxu0 0.0
        %737 = vmatpush1.xpose.msra.mxu0 0.0
        %738 = vmatprep.subr.mxu0 0.0
        %739 = vmatpush1.xpose.msra.mxu0 0.0
        %740 = vmatprep.subr.mxu0 0.0
        %741 = vmatpush1.xpose.msra.mxu0 0.0
        %742 = vmatprep.subr.mxu0 0.0
        %743 = vmatpush1.xpose.msra.mxu0 0.0
        %744 = vmatprep.subr.mxu0 0.0
        %745 = vmatpush1.xpose.msra.mxu0 0.0
        %746 = vmatprep.subr.mxu0 0.0
        %747 = vmatpush1.xpose.msra.mxu0 0.0
        %748 = vmatprep.subr.mxu0 0.0
        %749 = vmatpush1.xpose.msra.mxu0 0.0
        %750 = vmatprep.subr.mxu0 0.0
        %751 = vmatpush1.xpose.msra.mxu0 0.0
        %752 = vmatprep.subr.mxu0 0.0
        %753 = vmatpush1.xpose.msra.mxu0 0.0
        %754 = vmatprep.subr.mxu0 0.0
        %755 = vmatpush1.xpose.msra.mxu0 0.0
        %756 = vmatprep.subr.mxu0 0.0
        %757 = vmatpush1.xpose.msra.mxu0 0.0
        %758 = vmatprep.subr.mxu0 0.0
        %759 = vmatpush1.xpose.msra.mxu0 0.0
        %760 = vmatprep.subr.mxu0 0.0
        %761 = vmatpush1.xpose.msra.mxu0 0.0
        %762 = vmatprep.subr.mxu0 0.0
        %763 = vmatpush1.xpose.msra.mxu0 0.0
        %764 = vmatprep.subr.mxu0 0.0
        %765 = vmatpush1.xpose.msra.mxu0 0.0
        %766 = vmatprep.subr.mxu0 0.0
        %767 = vmatpush1.xpose.msra.mxu0 0.0
        %768 = vmatprep.subr.mxu0 0.0
        %769 = vmatpush1.xpose.msra.mxu0 0.0
        %770 = vmatprep.subr.mxu0 0.0
        %771 = vmatpush1.xpose.msra.mxu0 0.0
        %772 = vmatprep.subr.mxu0 0.0
        %773 = vmatpush1.xpose.msra.mxu0 0.0
        %774 = vmatprep.subr.mxu0 0.0
        %775 = vmatpush1.xpose.msra.mxu0 0.0
        %776 = vmatprep.mubr.f32.mxu0 0.0
        %777 = vmatmul.mubr.f32.gmra.mrb[0].mxu0 %v704
        %v778 = vpop.f32.mrb[0].mxu0
        %v779 = vadd.f32 0.0, %v778
        %v780 = vpop.f32.mrb[0].mxu0
        %781 = vdwg.mxu0
        %v783 = vsel %vm379, %v461, 0
        %v786 = vsel %vm379, %v577, 0
        %v789 = vsel %vm379, %v582, 0
        %791 = vmatprep.subr.mxu0 0.0
        %792 = vmatpush1.xpose.msra.mxu0 %v786
        %793 = vmatprep.subr.mxu0 0.0
        %794 = vmatpush1.xpose.msra.mxu0 %v789
        %795 = vmatprep.subr.mxu0 0.0
        %796 = vmatpush1.xpose.msra.mxu0 0.0
        %797 = vmatprep.subr.mxu0 0.0
        %798 = vmatpush1.xpose.msra.mxu0 0.0
        %799 = vmatprep.subr.mxu0 0.0
        %800 = vmatpush1.xpose.msra.mxu0 0.0
        %801 = vmatprep.subr.mxu0 0.0
        %802 = vmatpush1.xpose.msra.mxu0 0.0
        %803 = vmatprep.subr.mxu0 0.0
        %804 = vmatpush1.xpose.msra.mxu0 0.0
        %805 = vmatprep.subr.mxu0 0.0
        %806 = vmatpush1.xpose.msra.mxu0 0.0
        %807 = vmatprep.subr.mxu0 0.0
        %808 = vmatpush1.xpose.msra.mxu0 0.0
        %809 = vmatprep.subr.mxu0 0.0
        %810 = vmatpush1.xpose.msra.mxu0 0.0
        %811 = vmatprep.subr.mxu0 0.0
        %812 = vmatpush1.xpose.msra.mxu0 0.0
        %813 = vmatprep.subr.mxu0 0.0
        %814 = vmatpush1.xpose.msra.mxu0 0.0
        %815 = vmatprep.subr.mxu0 0.0
        %816 = vmatpush1.xpose.msra.mxu0 0.0
        %817 = vmatprep.subr.mxu0 0.0
        %818 = vmatpush1.xpose.msra.mxu0 0.0
        %819 = vmatprep.subr.mxu0 0.0
        %820 = vmatpush1.xpose.msra.mxu0 0.0
        %821 = vmatprep.subr.mxu0 0.0
        %822 = vmatpush1.xpose.msra.mxu0 0.0
        %823 = vmatprep.subr.mxu0 0.0
        %824 = vmatpush1.xpose.msra.mxu0 0.0
        %825 = vmatprep.subr.mxu0 0.0
        %826 = vmatpush1.xpose.msra.mxu0 0.0
        %827 = vmatprep.subr.mxu0 0.0
        %828 = vmatpush1.xpose.msra.mxu0 0.0
        %829 = vmatprep.subr.mxu0 0.0
        %830 = vmatpush1.xpose.msra.mxu0 0.0
        %831 = vmatprep.subr.mxu0 0.0
        %832 = vmatpush1.xpose.msra.mxu0 0.0
        %833 = vmatprep.subr.mxu0 0.0
        %834 = vmatpush1.xpose.msra.mxu0 0.0
        %835 = vmatprep.subr.mxu0 0.0
        %836 = vmatpush1.xpose.msra.mxu0 0.0
        %837 = vmatprep.subr.mxu0 0.0
        %838 = vmatpush1.xpose.msra.mxu0 0.0
        %839 = vmatprep.subr.mxu0 0.0
        %840 = vmatpush1.xpose.msra.mxu0 0.0
        %841 = vmatprep.subr.mxu0 0.0
        %842 = vmatpush1.xpose.msra.mxu0 0.0
        %843 = vmatprep.subr.mxu0 0.0
        %844 = vmatpush1.xpose.msra.mxu0 0.0
        %845 = vmatprep.subr.mxu0 0.0
        %846 = vmatpush1.xpose.msra.mxu0 0.0
        %847 = vmatprep.subr.mxu0 0.0
        %848 = vmatpush1.xpose.msra.mxu0 0.0
        %849 = vmatprep.subr.mxu0 0.0
        %850 = vmatpush1.xpose.msra.mxu0 0.0
        %851 = vmatprep.subr.mxu0 0.0
        %852 = vmatpush1.xpose.msra.mxu0 0.0
        %853 = vmatprep.subr.mxu0 0.0
        %854 = vmatpush1.xpose.msra.mxu0 0.0
        %855 = vmatprep.mubr.f32.mxu0 0.0
        %856 = vmatmul.mubr.f32.gmra.mrb[0].mxu0 %v783
        %v857 = vpop.f32.mrb[0].mxu0
        %v858 = vadd.f32 0.0, %v857
        %v859 = vpop.f32.mrb[0].mxu0
        %860 = vdwg.mxu0
        %v862 = vsel %vm379, %v466, 0
        %v865 = vsel %vm379, %v587, 0
        %v868 = vsel %vm379, %v592, 0
        %870 = vmatprep.subr.mxu0 0.0
        %871 = vmatpush1.xpose.msra.mxu0 %v865
        %872 = vmatprep.subr.mxu0 0.0
        %873 = vmatpush1.xpose.msra.mxu0 %v868
        %874 = vmatprep.subr.mxu0 0.0
        %875 = vmatpush1.xpose.msra.mxu0 0.0
        %876 = vmatprep.subr.mxu0 0.0
        %877 = vmatpush1.xpose.msra.mxu0 0.0
        %878 = vmatprep.subr.mxu0 0.0
        %879 = vmatpush1.xpose.msra.mxu0 0.0
        %880 = vmatprep.subr.mxu0 0.0
        %881 = vmatpush1.xpose.msra.mxu0 0.0
        %882 = vmatprep.subr.mxu0 0.0
        %883 = vmatpush1.xpose.msra.mxu0 0.0
        %884 = vmatprep.subr.mxu0 0.0
        %885 = vmatpush1.xpose.msra.mxu0 0.0
        %886 = vmatprep.subr.mxu0 0.0
        %887 = vmatpush1.xpose.msra.mxu0 0.0
        %888 = vmatprep.subr.mxu0 0.0
        %889 = vmatpush1.xpose.msra.mxu0 0.0
        %890 = vmatprep.subr.mxu0 0.0
        %891 = vmatpush1.xpose.msra.mxu0 0.0
        %892 = vmatprep.subr.mxu0 0.0
        %893 = vmatpush1.xpose.msra.mxu0 0.0
        %894 = vmatprep.subr.mxu0 0.0
        %895 = vmatpush1.xpose.msra.mxu0 0.0
        %896 = vmatprep.subr.mxu0 0.0
        %897 = vmatpush1.xpose.msra.mxu0 0.0
        %898 = vmatprep.subr.mxu0 0.0
        %899 = vmatpush1.xpose.msra.mxu0 0.0
        %900 = vmatprep.subr.mxu0 0.0
        %901 = vmatpush1.xpose.msra.mxu0 0.0
        %902 = vmatprep.subr.mxu0 0.0
        %903 = vmatpush1.xpose.msra.mxu0 0.0
        %904 = vmatprep.subr.mxu0 0.0
        %905 = vmatpush1.xpose.msra.mxu0 0.0
        %906 = vmatprep.subr.mxu0 0.0
        %907 = vmatpush1.xpose.msra.mxu0 0.0
        %908 = vmatprep.subr.mxu0 0.0
        %909 = vmatpush1.xpose.msra.mxu0 0.0
        %910 = vmatprep.subr.mxu0 0.0
        %911 = vmatpush1.xpose.msra.mxu0 0.0
        %912 = vmatprep.subr.mxu0 0.0
        %913 = vmatpush1.xpose.msra.mxu0 0.0
        %914 = vmatprep.subr.mxu0 0.0
        %915 = vmatpush1.xpose.msra.mxu0 0.0
        %916 = vmatprep.subr.mxu0 0.0
        %917 = vmatpush1.xpose.msra.mxu0 0.0
        %918 = vmatprep.subr.mxu0 0.0
        %919 = vmatpush1.xpose.msra.mxu0 0.0
        %920 = vmatprep.subr.mxu0 0.0
        %921 = vmatpush1.xpose.msra.mxu0 0.0
        %922 = vmatprep.subr.mxu0 0.0
        %923 = vmatpush1.xpose.msra.mxu0 0.0
        %924 = vmatprep.subr.mxu0 0.0
        %925 = vmatpush1.xpose.msra.mxu0 0.0
        %926 = vmatprep.subr.mxu0 0.0
        %927 = vmatpush1.xpose.msra.mxu0 0.0
        %928 = vmatprep.subr.mxu0 0.0
        %929 = vmatpush1.xpose.msra.mxu0 0.0
        %930 = vmatprep.subr.mxu0 0.0
        %931 = vmatpush1.xpose.msra.mxu0 0.0
        %932 = vmatprep.subr.mxu0 0.0
        %933 = vmatpush1.xpose.msra.mxu0 0.0
        %934 = vmatprep.mubr.f32.mxu0 0.0
        %935 = vmatmul.mubr.f32.gmra.mrb[0].mxu0 %v862
        %v936 = vpop.f32.mrb[0].mxu0
        %v937 = vadd.f32 0.0, %v936
        %v938 = vpop.f32.mrb[0].mxu0
        %939 = vdwg.mxu0
        %v940 = vld [vmem:[%s355] sm:$0x1]
        %v941 = vld [vmem:[%s355 + $0x1] sm:$0x1]
        %v942 = vld [vmem:[%s355 + $0x2] sm:$0x1]
        %vm943 = vcmp.ne.s32.totalorder %v940, 0
        %vm944 = vcmp.ne.s32.totalorder %v941, 0
        %vm945 = vcmp.ne.s32.totalorder %v942, 0
        %v946 = vsel %vm943, 1, 0
        %v947 = vsel %vm944, 1, 0
        %v948 = vsel %vm945, 1, 0
        %v949 = vlaneseq
        %v950 = vshrl.u32 %v949, 7
        %v951 = vsub.s32 0, %v950
        %v952 = vrot.slane %v946, %v951
        %v953 = vlaneseq
        %v954 = vshrl.u32 %v953, 7
        %v955 = vsub.s32 0, %v954
        %v956 = vrot.slane %v947, %v955
        %v957 = vlaneseq
        %v958 = vshrl.u32 %v957, 7
        %v959 = vsub.s32 0, %v958
        %v960 = vrot.slane %v948, %v959
        %vm961 = vcmp.eq.s32.totalorder %v952, 1
        %vm962 = vcmp.eq.s32.totalorder %v956, 1
        %vm963 = vcmp.eq.s32.totalorder %v960, 1
        %v964 = vsel %vm961, -1e+30, %v779
        %v965 = vsel %vm962, -1e+30, %v858
        %v966 = vsel %vm963, -1e+30, %v937
        %vm967 = vcmask 130048
        %v968 = vsel %vm967, %v964, -inf
        %969 = vmax.xlane.f32.xlu0 %v968
        %v970 = vpop.xlane.xlu0 %969
        %v971 = vsel %vm967, %v965, -inf
        %972 = vmax.xlane.f32.xlu0 %v971
        %v973 = vpop.xlane.xlu0 %972
        %v974 = vsel %vm967, %v966, -inf
        %975 = vmax.xlane.f32.xlu0 %v974
        %v976 = vpop.xlane.xlu0 %975
        %v977 = vsub.f32 %v964, %v970
        %v978 = vsub.f32 %v965, %v973
        %v979 = vsub.f32 %v966, %v976
        %v980 = vmul.f32 %v977, 1.442695
        %v981 = vpow.pop %v980
        %v982 = vmul.f32 %v978, 1.442695
        %v983 = vpow.pop %v982
        %v984 = vmul.f32 %v979, 1.442695
        %v985 = vpow.pop %v984
        %v986 = vsel %vm967, %v981, 0.0
        %987 = vadd.xlane.f32.xlu0 %v986
        %v988 = vpop.xlane.xlu0 %987
        %v989 = vsel %vm967, %v983, 0.0
        %990 = vadd.xlane.f32.xlu0 %v989
        %v991 = vpop.xlane.xlu0 %990
        %v992 = vsel %vm967, %v985, 0.0
        %993 = vadd.xlane.f32.xlu0 %v992
        %v994 = vpop.xlane.xlu0 %993
        %v995 = vrcp.pop %v988
        %v996 = vrcp.pop %v991
        %v997 = vrcp.pop %v994
        %v998 = vmul.f32 %v981, %v995
        %v999 = vmul.f32 %v983, %v996
        %v1000 = vmul.f32 %v985, %v997
        %v1002 = vsel %vm967, %v998, 0
        %1004 = vmatprep.subr.mxu0 0.0
        %1005 = vmatpush1.msra.mxu0 %v675
        %1006 = vmatprep.subr.mxu0 0.0
        %1007 = vmatpush1.msra.mxu0 %v680
        %1008 = vmatprep.subr.mxu0 0.0
        %1009 = vmatpush1.msra.mxu0 0.0
        %1010 = vmatprep.subr.mxu0 0.0
        %1011 = vmatpush1.msra.mxu0 0.0
        %1012 = vmatprep.subr.mxu0 0.0
        %1013 = vmatpush1.msra.mxu0 0.0
        %1014 = vmatprep.subr.mxu0 0.0
        %1015 = vmatpush1.msra.mxu0 0.0
        %1016 = vmatprep.subr.mxu0 0.0
        %1017 = vmatpush1.msra.mxu0 0.0
        %1018 = vmatprep.subr.mxu0 0.0
        %1019 = vmatpush1.msra.mxu0 0.0
        %1020 = vmatprep.subr.mxu0 0.0
        %1021 = vmatpush1.msra.mxu0 0.0
        %1022 = vmatprep.subr.mxu0 0.0
        %1023 = vmatpush1.msra.mxu0 0.0
        %1024 = vmatprep.subr.mxu0 0.0
        %1025 = vmatpush1.msra.mxu0 0.0
        %1026 = vmatprep.subr.mxu0 0.0
        %1027 = vmatpush1.msra.mxu0 0.0
        %1028 = vmatprep.subr.mxu0 0.0
        %1029 = vmatpush1.msra.mxu0 0.0
        %1030 = vmatprep.subr.mxu0 0.0
        %1031 = vmatpush1.msra.mxu0 0.0
        %1032 = vmatprep.subr.mxu0 0.0
        %1033 = vmatpush1.msra.mxu0 0.0
        %1034 = vmatprep.subr.mxu0 0.0
        %1035 = vmatpush1.msra.mxu0 0.0
        %1036 = vmatprep.subr.mxu0 0.0
        %1037 = vmatpush1.msra.mxu0 0.0
        %1038 = vmatprep.subr.mxu0 0.0
        %1039 = vmatpush1.msra.mxu0 0.0
        %1040 = vmatprep.subr.mxu0 0.0
        %1041 = vmatpush1.msra.mxu0 0.0
        %1042 = vmatprep.subr.mxu0 0.0
        %1043 = vmatpush1.msra.mxu0 0.0
        %1044 = vmatprep.subr.mxu0 0.0
        %1045 = vmatpush1.msra.mxu0 0.0
        %1046 = vmatprep.subr.mxu0 0.0
        %1047 = vmatpush1.msra.mxu0 0.0
        %1048 = vmatprep.subr.mxu0 0.0
        %1049 = vmatpush1.msra.mxu0 0.0
        %1050 = vmatprep.subr.mxu0 0.0
        %1051 = vmatpush1.msra.mxu0 0.0
        %1052 = vmatprep.subr.mxu0 0.0
        %1053 = vmatpush1.msra.mxu0 0.0
        %1054 = vmatprep.subr.mxu0 0.0
        %1055 = vmatpush1.msra.mxu0 0.0
        %1056 = vmatprep.subr.mxu0 0.0
        %1057 = vmatpush1.msra.mxu0 0.0
        %1058 = vmatprep.subr.mxu0 0.0
        %1059 = vmatpush1.msra.mxu0 0.0
        %1060 = vmatprep.subr.mxu0 0.0
        %1061 = vmatpush1.msra.mxu0 0.0
        %1062 = vmatprep.subr.mxu0 0.0
        %1063 = vmatpush1.msra.mxu0 0.0
        %1064 = vmatprep.subr.mxu0 0.0
        %1065 = vmatpush1.msra.mxu0 0.0
        %1066 = vmatprep.subr.mxu0 0.0
        %1067 = vmatpush1.msra.mxu0 0.0
        %1068 = vmatprep.mubr.f32.mxu0 0.0
        %1069 = vmatmul.mubr.f32.gmra.mrb[0].mxu0 %v1002
        %v1070 = vpop.f32.mrb[0].mxu0
        %v1071 = vadd.f32 0.0, %v1070
        %v1072 = vpop.f32.mrb[0].mxu0
        %1073 = vdwg.mxu0
        %v1075 = vsel %vm967, %v999, 0
        %1077 = vmatprep.subr.mxu0 0.0
        %1078 = vmatpush1.msra.mxu0 %v685
        %1079 = vmatprep.subr.mxu0 0.0
        %1080 = vmatpush1.msra.mxu0 %v690
        %1081 = vmatprep.subr.mxu0 0.0
        %1082 = vmatpush1.msra.mxu0 0.0
        %1083 = vmatprep.subr.mxu0 0.0
        %1084 = vmatpush1.msra.mxu0 0.0
        %1085 = vmatprep.subr.mxu0 0.0
        %1086 = vmatpush1.msra.mxu0 0.0
        %1087 = vmatprep.subr.mxu0 0.0
        %1088 = vmatpush1.msra.mxu0 0.0
        %1089 = vmatprep.subr.mxu0 0.0
        %1090 = vmatpush1.msra.mxu0 0.0
        %1091 = vmatprep.subr.mxu0 0.0
        %1092 = vmatpush1.msra.mxu0 0.0
        %1093 = vmatprep.subr.mxu0 0.0
        %1094 = vmatpush1.msra.mxu0 0.0
        %1095 = vmatprep.subr.mxu0 0.0
        %1096 = vmatpush1.msra.mxu0 0.0
        %1097 = vmatprep.subr.mxu0 0.0
        %1098 = vmatpush1.msra.mxu0 0.0
        %1099 = vmatprep.subr.mxu0 0.0
        %1100 = vmatpush1.msra.mxu0 0.0
        %1101 = vmatprep.subr.mxu0 0.0
        %1102 = vmatpush1.msra.mxu0 0.0
        %1103 = vmatprep.subr.mxu0 0.0
        %1104 = vmatpush1.msra.mxu0 0.0
        %1105 = vmatprep.subr.mxu0 0.0
        %1106 = vmatpush1.msra.mxu0 0.0
        %1107 = vmatprep.subr.mxu0 0.0
        %1108 = vmatpush1.msra.mxu0 0.0
        %1109 = vmatprep.subr.mxu0 0.0
        %1110 = vmatpush1.msra.mxu0 0.0
        %1111 = vmatprep.subr.mxu0 0.0
        %1112 = vmatpush1.msra.mxu0 0.0
        %1113 = vmatprep.subr.mxu0 0.0
        %1114 = vmatpush1.msra.mxu0 0.0
        %1115 = vmatprep.subr.mxu0 0.0
        %1116 = vmatpush1.msra.mxu0 0.0
        %1117 = vmatprep.subr.mxu0 0.0
        %1118 = vmatpush1.msra.mxu0 0.0
        %1119 = vmatprep.subr.mxu0 0.0
        %1120 = vmatpush1.msra.mxu0 0.0
        %1121 = vmatprep.subr.mxu0 0.0
        %1122 = vmatpush1.msra.mxu0 0.0
        %1123 = vmatprep.subr.mxu0 0.0
        %1124 = vmatpush1.msra.mxu0 0.0
        %1125 = vmatprep.subr.mxu0 0.0
        %1126 = vmatpush1.msra.mxu0 0.0
        %1127 = vmatprep.subr.mxu0 0.0
        %1128 = vmatpush1.msra.mxu0 0.0
        %1129 = vmatprep.subr.mxu0 0.0
        %1130 = vmatpush1.msra.mxu0 0.0
        %1131 = vmatprep.subr.mxu0 0.0
        %1132 = vmatpush1.msra.mxu0 0.0
        %1133 = vmatprep.subr.mxu0 0.0
        %1134 = vmatpush1.msra.mxu0 0.0
        %1135 = vmatprep.subr.mxu0 0.0
        %1136 = vmatpush1.msra.mxu0 0.0
        %1137 = vmatprep.subr.mxu0 0.0
        %1138 = vmatpush1.msra.mxu0 0.0
        %1139 = vmatprep.subr.mxu0 0.0
        %1140 = vmatpush1.msra.mxu0 0.0
        %1141 = vmatprep.mubr.f32.mxu0 0.0
        %1142 = vmatmul.mubr.f32.gmra.mrb[0].mxu0 %v1075
        %v1143 = vpop.f32.mrb[0].mxu0
        %v1144 = vadd.f32 0.0, %v1143
        %v1145 = vpop.f32.mrb[0].mxu0
        %1146 = vdwg.mxu0
        %v1148 = vsel %vm967, %v1000, 0
        %1150 = vmatprep.subr.mxu0 0.0
        %1151 = vmatpush1.msra.mxu0 %v695
        %1152 = vmatprep.subr.mxu0 0.0
        %1153 = vmatpush1.msra.mxu0 %v700
        %1154 = vmatprep.subr.mxu0 0.0
        %1155 = vmatpush1.msra.mxu0 0.0
        %1156 = vmatprep.subr.mxu0 0.0
        %1157 = vmatpush1.msra.mxu0 0.0
        %1158 = vmatprep.subr.mxu0 0.0
        %1159 = vmatpush1.msra.mxu0 0.0
        %1160 = vmatprep.subr.mxu0 0.0
        %1161 = vmatpush1.msra.mxu0 0.0
        %1162 = vmatprep.subr.mxu0 0.0
        %1163 = vmatpush1.msra.mxu0 0.0
        %1164 = vmatprep.subr.mxu0 0.0
        %1165 = vmatpush1.msra.mxu0 0.0
        %1166 = vmatprep.subr.mxu0 0.0
        %1167 = vmatpush1.msra.mxu0 0.0
        %1168 = vmatprep.subr.mxu0 0.0
        %1169 = vmatpush1.msra.mxu0 0.0
        %1170 = vmatprep.subr.mxu0 0.0
        %1171 = vmatpush1.msra.mxu0 0.0
        %1172 = vmatprep.subr.mxu0 0.0
        %1173 = vmatpush1.msra.mxu0 0.0
        %1174 = vmatprep.subr.mxu0 0.0
        %1175 = vmatpush1.msra.mxu0 0.0
        %1176 = vmatprep.subr.mxu0 0.0
        %1177 = vmatpush1.msra.mxu0 0.0
        %1178 = vmatprep.subr.mxu0 0.0
        %1179 = vmatpush1.msra.mxu0 0.0
        %1180 = vmatprep.subr.mxu0 0.0
        %1181 = vmatpush1.msra.mxu0 0.0
        %1182 = vmatprep.subr.mxu0 0.0
        %1183 = vmatpush1.msra.mxu0 0.0
        %1184 = vmatprep.subr.mxu0 0.0
        %1185 = vmatpush1.msra.mxu0 0.0
        %1186 = vmatprep.subr.mxu0 0.0
        %1187 = vmatpush1.msra.mxu0 0.0
        %1188 = vmatprep.subr.mxu0 0.0
        %1189 = vmatpush1.msra.mxu0 0.0
        %1190 = vmatprep.subr.mxu0 0.0
        %1191 = vmatpush1.msra.mxu0 0.0
        %1192 = vmatprep.subr.mxu0 0.0
        %1193 = vmatpush1.msra.mxu0 0.0
        %1194 = vmatprep.subr.mxu0 0.0
        %1195 = vmatpush1.msra.mxu0 0.0
        %1196 = vmatprep.subr.mxu0 0.0
        %1197 = vmatpush1.msra.mxu0 0.0
        %1198 = vmatprep.subr.mxu0 0.0
        %1199 = vmatpush1.msra.mxu0 0.0
        %1200 = vmatprep.subr.mxu0 0.0
        %1201 = vmatpush1.msra.mxu0 0.0
        %1202 = vmatprep.subr.mxu0 0.0
        %1203 = vmatpush1.msra.mxu0 0.0
        %1204 = vmatprep.subr.mxu0 0.0
        %1205 = vmatpush1.msra.mxu0 0.0
        %1206 = vmatprep.subr.mxu0 0.0
        %1207 = vmatpush1.msra.mxu0 0.0
        %1208 = vmatprep.subr.mxu0 0.0
        %1209 = vmatpush1.msra.mxu0 0.0
        %1210 = vmatprep.subr.mxu0 0.0
        %1211 = vmatpush1.msra.mxu0 0.0
        %1212 = vmatprep.subr.mxu0 0.0
        %1213 = vmatpush1.msra.mxu0 0.0
        %1214 = vmatprep.mubr.f32.mxu0 0.0
        %1215 = vmatmul.mubr.f32.gmra.mrb[0].mxu0 %v1148
        %v1216 = vpop.f32.mrb[0].mxu0
        %v1217 = vadd.f32 0.0, %v1216
        %v1218 = vpop.f32.mrb[0].mxu0
        %1219 = vdwg.mxu0
        %s1220 = scalar_lea.vmem [#allocation7], 96
        %v1221 = vld [vmem:[%s1220] sm:$0xff]
        %v1222 = vld [vmem:[%s1220 + $0x8] sm:$0xff]
        %v1223 = vld [vmem:[%s1220 + $0x10] sm:$0xff]
        %v1224 = vld [vmem:[%s1220 + $0x18] sm:$0xff]
        %s1225 = scalar_lea.vmem %s4, 3
        %v1226 = vld [vmem:[%s1225] sm:$0x1]
        %v1228 = vlaneseq
        %v1229 = vshrl.u32 %v1228, 7
        %v1230 = vsub.s32 0, %v1229
        %v1231 = vrot.slane %v1226, %v1230
        %v1234 = vsel %vm379, %v1071, 0
        %v1237 = vsel %vm379, %v1144, 0
        %v1240 = vsel %vm379, %v1217, 0
        %1242 = vmatprep.subr.mxu0 0.0
        %1243 = vmatpush1.msra.mxu0 %v1221
        %1244 = vmatprep.subr.mxu0 0.0
        %1245 = vmatpush1.msra.mxu0 %v1222
        %1246 = vmatprep.subr.mxu0 0.0
        %1247 = vmatpush1.msra.mxu0 %v1223
        %1248 = vmatprep.subr.mxu0 0.0
        %1249 = vmatpush1.msra.mxu0 %v1224
        %1250 = vmatprep.subr.mxu0 0.0
        %1251 = vmatpush1.msra.mxu0 0.0
        %1252 = vmatprep.subr.mxu0 0.0
        %1253 = vmatpush1.msra.mxu0 0.0
        %1254 = vmatprep.subr.mxu0 0.0
        %1255 = vmatpush1.msra.mxu0 0.0
        %1256 = vmatprep.subr.mxu0 0.0
        %1257 = vmatpush1.msra.mxu0 0.0
        %1258 = vmatprep.subr.mxu0 0.0
        %1259 = vmatpush1.msra.mxu0 0.0
        %1260 = vmatprep.subr.mxu0 0.0
        %1261 = vmatpush1.msra.mxu0 0.0
        %1262 = vmatprep.subr.mxu0 0.0
        %1263 = vmatpush1.msra.mxu0 0.0
        %1264 = vmatprep.subr.mxu0 0.0
        %1265 = vmatpush1.msra.mxu0 0.0
        %1266 = vmatprep.subr.mxu0 0.0
        %1267 = vmatpush1.msra.mxu0 0.0
        %1268 = vmatprep.subr.mxu0 0.0
        %1269 = vmatpush1.msra.mxu0 0.0
        %1270 = vmatprep.subr.mxu0 0.0
        %1271 = vmatpush1.msra.mxu0 0.0
        %1272 = vmatprep.subr.mxu0 0.0
        %1273 = vmatpush1.msra.mxu0 0.0
        %1274 = vmatprep.subr.mxu0 0.0
        %1275 = vmatpush1.msra.mxu0 0.0
        %1276 = vmatprep.subr.mxu0 0.0
        %1277 = vmatpush1.msra.mxu0 0.0
        %1278 = vmatprep.subr.mxu0 0.0
        %1279 = vmatpush1.msra.mxu0 0.0
        %1280 = vmatprep.subr.mxu0 0.0
        %1281 = vmatpush1.msra.mxu0 0.0
        %1282 = vmatprep.subr.mxu0 0.0
        %1283 = vmatpush1.msra.mxu0 0.0
        %1284 = vmatprep.subr.mxu0 0.0
        %1285 = vmatpush1.msra.mxu0 0.0
        %1286 = vmatprep.subr.mxu0 0.0
        %1287 = vmatpush1.msra.mxu0 0.0
        %1288 = vmatprep.subr.mxu0 0.0
        %1289 = vmatpush1.msra.mxu0 0.0
        %1290 = vmatprep.subr.mxu0 0.0
        %1291 = vmatpush1.msra.mxu0 0.0
        %1292 = vmatprep.subr.mxu0 0.0
        %1293 = vmatpush1.msra.mxu0 0.0
        %1294 = vmatprep.subr.mxu0 0.0
        %1295 = vmatpush1.msra.mxu0 0.0
        %1296 = vmatprep.subr.mxu0 0.0
        %1297 = vmatpush1.msra.mxu0 0.0
        %1298 = vmatprep.subr.mxu0 0.0
        %1299 = vmatpush1.msra.mxu0 0.0
        %1300 = vmatprep.subr.mxu0 0.0
        %1301 = vmatpush1.msra.mxu0 0.0
        %1302 = vmatprep.subr.mxu0 0.0
        %1303 = vmatpush1.msra.mxu0 0.0
        %1304 = vmatprep.subr.mxu0 0.0
        %1305 = vmatpush1.msra.mxu0 0.0
        %1306 = vmatprep.mubr.f32.mxu0 0.0
        %1307 = vmatmul.mubr.f32.gmra.mrb[0].mxu0 %v1234
        %v1308 = vpop.f32.mrb[0].mxu0
        %v1309 = vadd.f32 %v1231, %v1308
        %v1310 = vpop.f32.mrb[0].mxu0
        %1311 = vmatprep.mubr.f32.mxu0 0.0
        %1312 = vmatmul.mubr.f32.gmra.mrb[0].mxu0 %v1237
        %v1313 = vpop.f32.mrb[0].mxu0
        %v1314 = vadd.f32 %v1231, %v1313
        %v1315 = vpop.f32.mrb[0].mxu0
        %1316 = vmatprep.mubr.f32.mxu0 0.0
        %1317 = vmatmul.mubr.f32.gmra.mrb[0].mxu0 %v1240
        %v1318 = vpop.f32.mrb[0].mxu0
        %v1319 = vadd.f32 %v1231, %v1318
        %v1320 = vpop.f32.mrb[0].mxu0
        %1321 = vdwg.mxu0
        %1322 = vst.msk [vmem:[%s342] sm:$0xff] %vm379, %v1309
        %1323 = vst.msk [vmem:[%s342 + $0x8] sm:$0xff] %vm379, %v1314
        %1324 = vst.msk [vmem:[%s342 + $0x10] sm:$0xff] %vm379, %v1319
        %1325 = vst.msk [vmem:[%s349] sm:$0xff] %vm967, %v998
        %1326 = vst.msk [vmem:[%s349 + $0x8] sm:$0xff] %vm967, %v999
        %1327 = vst.msk [vmem:[%s349 + $0x10] sm:$0xff] %vm967, %v1000
        %s1328 = sand.u32 %s158, 1
        %s1329 = scalar_lea.sflag [#allocation4], %s1328
        %s1330 = sand.u32 %s158, 1
        %s1331 = smul.addr %s1330, 24
        %s1332 = scalar_lea.vmem [#allocation8], %s1331
        %s1333 = sand.u32 %s184, 1
        %s1334 = scalar_lea.sflag [#allocation10], %s1333
        %s1335 = sand.u32 %s184, 1
        %s1336 = smul.addr %s1335, 24
        %s1337 = scalar_lea.vmem [#allocation9], %s1336
        // Predicated region
        $region53: #{tpu_custom_call.1} parent=39 // pred_check
          %p1338 = pneg %p168
        $region54: #{tpu_custom_call.1} parent=39 // pred_check_branch
          %1340 = sbr.rel (%p1338) target = $region56
        $region55: #{tpu_custom_call.1} parent=39 // pred_region
          %s1341 = smul.u32 3, %s30
          %s1343 = ssub.s32 384, 384
          %1344 = vsyncadd %s1329, %s1343
          %s1345 = smul.addr %s1341, 128
          %s1346 = scalar_lea.hbm %s5, %s1345
          %s1347 = sshll.u32 %s1332, 4
          %s1348 = int_to_ptr.vmem [resolvable:$true] %s1347
          %1353 = dma.vmem_to_hbm [thread:$0]  %s1348, 384, %s1346, %s1329, 128, 128, 8
        $region56: #{tpu_custom_call.1} parent=39 // pred_fallthru
          _
        // Predicated region
        $region57: #{tpu_custom_call.1} parent=39 // pred_check
          %p1354 = pneg %p194
        $region58: #{tpu_custom_call.1} parent=39 // pred_check_branch
          %1356 = sbr.rel (%p1354) target = $region60
        $region59: #{tpu_custom_call.1} parent=39 // pred_region
          %s1357 = smul.u32 3, %s30
          %s1359 = ssub.s32 384, 384
          %1360 = vsyncadd %s1334, %s1359
          %s1361 = smul.addr %s1357, 128
          %s1362 = scalar_lea.hbm %s6, %s1361
          %s1363 = sshll.u32 %s1337, 4
          %s1364 = int_to_ptr.vmem [resolvable:$true] %s1363
          %1369 = dma.vmem_to_hbm [thread:$0]  %s1364, 384, %s1362, %s1334, 128, 128, 8
        $region60: #{tpu_custom_call.1} parent=39 // pred_fallthru
          _
      $region40: #{tpu_custom_call.1} parent=5 // pred_fallthru
        _
      %p1370 = scmp.le.s32.totalorder 2, %s25
      // Predicated region
      $region61: #{tpu_custom_call.1} parent=5 // pred_check
        %p1371 = pneg %p1370
      $region62: #{tpu_custom_call.1} parent=5 // pred_check_branch
        %1373 = sbr.rel (%p1371) target = $region64
      $region63: #{tpu_custom_call.1} parent=5 // pred_region
        %s1374 = ssub.s32 %s25, 2
        // Predicated region
        $region65: #{tpu_custom_call.1} parent=63 // pred_check
          %p1375 = pneg %p174
        $region66: #{tpu_custom_call.1} parent=63 // pred_check_branch
          %1377 = sbr.rel (%p1375) target = $region68
        $region67: #{tpu_custom_call.1} parent=63 // pred_region
          %s1378 = sand.u32 %s159, 1
          %s1379 = scalar_lea.sflag [#allocation4], %s1378
          %s1380 = sand.u32 %s159, 1
          %s1381 = smul.addr %s1380, 24
          %s1382 = scalar_lea.vmem [#allocation8], %s1381
          %1383 = dma.done %s1379, 384
        $region68: #{tpu_custom_call.1} parent=63 // pred_fallthru
          _
        // Predicated region
        $region69: #{tpu_custom_call.1} parent=63 // pred_check
          %p1384 = pneg %p200
        $region70: #{tpu_custom_call.1} parent=63 // pred_check_branch
          %1386 = sbr.rel (%p1384) target = $region72
        $region71: #{tpu_custom_call.1} parent=63 // pred_region
          %s1387 = sand.u32 %s185, 1
          %s1388 = scalar_lea.sflag [#allocation10], %s1387
          %s1389 = sand.u32 %s185, 1
          %s1390 = smul.addr %s1389, 24
          %s1391 = scalar_lea.vmem [#allocation9], %s1390
          %1392 = dma.done %s1388, 384
        $region72: #{tpu_custom_call.1} parent=63 // pred_fallthru
          _
      $region64: #{tpu_custom_call.1} parent=5 // pred_fallthru
        _
    $region6: #{tpu_custom_call.1} parent=1 // loop_footer
      %s29 = sadd.s32 1, %s25
    $region7: #{tpu_custom_call.1} parent=1 // loop_footer_branch
      %24 = sbr.rel target = $region3
    $region8: #{tpu_custom_call.1} parent=1 // loop_exit
      _
    %1393 = vsyncpa [#allocation3], 1
    %s1394 = scalar_lea.sflag [#allocation3], 1
    %1395 = vsyncpa %s1394, 1
    %1396 = vsyncpa [#allocation6], 1
    %s1397 = scalar_lea.sflag [#allocation6], 1
    %1398 = vsyncpa %s1397, 1
    %1399 = vsyncpa [#allocation4], 1
    %s1400 = scalar_lea.sflag [#allocation4], 1
    %1401 = vsyncpa %s1400, 1
    %1402 = vsyncpa [#allocation10], 1
    %s1403 = scalar_lea.sflag [#allocation10], 1
    %1404 = vsyncpa %s1403, 1

</llo_original>
